<compile_context>
chip_gen: v7x
topology: tpu7x:2x2x1
jax: 0.10.0
libtpu: 0.0.40
codegen_flags: <defaults>
</compile_context>

<pallas_src>
import functools

import numpy as np
import jax
import jax.numpy as jnp
from jax.experimental import pallas as pl
from jax.experimental.pallas import tpu as pltpu


# -----------------------------------------------------------------------------
# Fused kernel
# -----------------------------------------------------------------------------
def _fused_head_kernel(x_ref, w1_ref, s1_ref, t1_ref,
                       w2_ref, s2_ref, t2_ref, w3_ref, b3_ref,
                       o_ref, a1_ref, a2_ref, *, H, W, cin, mid, cout):
    """Conv3x3+BN+SiLU -> Conv3x3+BN+SiLU -> Conv1x1+bias for one image.

    Lane-flattened layout: a C-channel activation is a (rows, W*C) slab with
    row = image row and lane = w*C + c.

    x_ref : (1, H, W*cin)        input image
    w1_ref: (3, W*cin, W*mid)    banded 3x3 weights, one matrix per kernel row dy
    s1/t1 : (1, W*mid)           folded-BN scale / shift (tiled over w)
    w2_ref: (3, W*mid, W*mid)
    s2/t2 : (1, W*mid)
    w3_ref: (W*mid, W*cout)      block-diagonal 1x1 weights
    b3_ref: (1, W*cout)          bias (tiled over w)
    o_ref : (1, H, W*cout)       lane-dense output slab
    a1_ref: VMEM (H+2, W*cin)    row-padded layer-1 input (halo rows = 0)
    a2_ref: VMEM (H+2, W*mid)    row-padded layer-2 input
    """
    cdt = a1_ref.dtype

    def conv3x3_bn_silu(a_ref, w_ref, s_ref, t_ref, n_out):
        acc = jnp.zeros((H, W * n_out), jnp.float32)
        for dy in range(3):                               # 3 row-shifted MXU matmuls
            acc += jnp.dot(a_ref[dy:dy + H, :], w_ref[dy],
                           preferred_element_type=jnp.float32)
        y = acc * s_ref[...] + t_ref[...]                 # folded BatchNorm (inference)
        return y * jax.nn.sigmoid(y)                      # SiLU

    # ---- Conv(in -> mid, 3) + BN + SiLU ------------------------------------
    a1_ref[...] = jnp.zeros_like(a1_ref)                  # zero 1-row halo (top/bottom)
    a1_ref[1:H + 1, :] = x_ref[0].astype(cdt)
    y1 = conv3x3_bn_silu(a1_ref, w1_ref, s1_ref, t1_ref, mid)

    # ---- Conv(mid -> mid, 3) + BN + SiLU (intermediate stays in VMEM) -------
    a2_ref[...] = jnp.zeros_like(a2_ref)
    a2_ref[1:H + 1, :] = y1.astype(cdt)
    y2 = conv3x3_bn_silu(a2_ref, w2_ref, s2_ref, t2_ref, mid)

    # ---- Conv2d(mid -> 4*num_reg_preds, 1) with bias ------------------------
    out = jnp.dot(y2.astype(cdt), w3_ref[...],
                  preferred_element_type=jnp.float32) + b3_ref[...]
    o_ref[...] = out[None].astype(o_ref.dtype)            # single lane-dense store


# -----------------------------------------------------------------------------
# Wrapper (pallas_call glue)
# -----------------------------------------------------------------------------
def yolov10_regression_head_pallas(x_nchw, packed):
    """x_nchw: (N, C_in, H, W) -> (N, 4*num_reg_preds, H, W), matching PyTorch."""
    N, cin, H, W = x_nchw.shape
    cdt = packed["w1"].dtype
    mid = packed["s1"].shape[1] // W
    cout = packed["b3"].shape[1] // W

    # NCHW -> lane-flattened (N, H, W*cin). Layout plumbing outside the kernel.
    x = jnp.transpose(x_nchw, (0, 2, 3, 1)).reshape(N, H, W * cin).astype(cdt)

    kern = functools.partial(_fused_head_kernel, H=H, W=W, cin=cin, mid=mid, cout=cout)

    def full(a):  # whole-array block, constant across the grid (fetched once)
        return pl.BlockSpec(a.shape, lambda n, nd=a.ndim: (0,) * nd)

    out = pl.pallas_call(
        kern,
        out_shape=jax.ShapeDtypeStruct((N, H, W * cout), jnp.float32),
        grid=(N,),
        in_specs=[
            pl.BlockSpec((1, H, W * cin), lambda n: (n, 0, 0)),
            full(packed["w1"]), full(packed["s1"]), full(packed["t1"]),
            full(packed["w2"]), full(packed["s2"]), full(packed["t2"]),
            full(packed["w3"]), full(packed["b3"]),
        ],
        out_specs=pl.BlockSpec((1, H, W * cout), lambda n: (n, 0, 0)),
        scratch_shapes=[
            pltpu.VMEM((H + 2, W * cin), cdt),
            pltpu.VMEM((H + 2, W * mid), cdt),
        ],
        compiler_params=pltpu.CompilerParams(
            dimension_semantics=("parallel",)),
    )(x, packed["w1"], packed["s1"], packed["t1"],
      packed["w2"], packed["s2"], packed["t2"],
      packed["w3"], packed["b3"])

    out = out.reshape(N, H, W, cout)
    return jnp.transpose(out, (0, 3, 1, 2))                # NHWC -> NCHW


# -----------------------------------------------------------------------------
# One-time parameter repacking (host side, done once at init)
# -----------------------------------------------------------------------------
def _fold_bn(gamma, beta, mean, var, eps):
    scale = gamma / np.sqrt(var + eps)
    return scale, beta - mean * scale


def _banded_conv3x3(w_oihw, W):
    """(M, C, 3, 3) -> (3, W*C, W*M) banded weights for the lane-flattened layout.

    slab[dy, src*C + c, w*M + m] = w[m, c, dy, dx] with src = w + dx - 1;
    out-of-range src (zero padding along W) is simply dropped.
    """
    M, C = w_oihw.shape[0], w_oihw.shape[1]
    wt = np.transpose(w_oihw, (2, 3, 1, 0))                # (dy, dx, C, M)
    slab = np.zeros((3, W * C, W * M), np.float32)
    for dy in range(3):
        for dx in range(3):
            for w in range(W):
                src = w + dx - 1
                if 0 <= src < W:
                    slab[dy, src * C:(src + 1) * C, w * M:(w + 1) * M] = wt[dy, dx]
    return slab


def _blockdiag_conv1x1(w_oihw, W):
    """(O, I, 1, 1) -> (W*I, W*O) block-diagonal weights."""
    mat = np.transpose(w_oihw[:, :, 0, 0], (1, 0))         # (I, O)
    return np.kron(np.eye(W, dtype=np.float32), mat)


def pack_params(params, W, compute_dtype=jnp.float32):
    p = {k: np.asarray(v) for k, v in params.items() if k != "bn_eps"}
    eps = params["bn_eps"]
    s1, t1 = _fold_bn(p["bn1_gamma"], p["bn1_beta"], p["bn1_mean"], p["bn1_var"], eps)
    s2, t2 = _fold_bn(p["bn2_gamma"], p["bn2_beta"], p["bn2_mean"], p["bn2_var"], eps)
    f32 = jnp.float32
    return {
        "w1": jnp.asarray(_banded_conv3x3(p["w1"], W), compute_dtype),
        "s1": jnp.asarray(np.tile(s1, W)[None, :], f32),
        "t1": jnp.asarray(np.tile(t1, W)[None, :], f32),
        "w2": jnp.asarray(_banded_conv3x3(p["w2"], W), compute_dtype),
        "s2": jnp.asarray(np.tile(s2, W)[None, :], f32),
        "t2": jnp.asarray(np.tile(t2, W)[None, :], f32),
        "w3": jnp.asarray(_blockdiag_conv1x1(p["w3"], W), compute_dtype),
        "b3": jnp.asarray(np.tile(p["b3"], W)[None, :], f32),
    }


# -----------------------------------------------------------------------------
# Synthetic parameters (deterministic) and pure-JAX reference
# -----------------------------------------------------------------------------
def make_params(key, in_channels, mid_channels, num_reg_preds=16, bn_eps=1e-3):
    num_reg_coords_preds = 4 * num_reg_preds
    ks = jax.random.split(key, 11)

    def conv_w(k, cout, cin, kh, kw):
        return 0.1 * jax.random.normal(k, (cout, cin, kh, kw), jnp.float32)

    p = {}
    p["w1"] = conv_w(ks[0], mid_channels, in_channels, 3, 3)
    p["bn1_gamma"] = 1.0 + 0.1 * jax.random.normal(ks[1], (mid_channels,), jnp.float32)
    p["bn1_beta"] = 0.1 * jax.random.normal(ks[2], (mid_channels,), jnp.float32)
    p["bn1_mean"] = 0.1 * jax.random.normal(ks[3], (mid_channels,), jnp.float32)
    p["bn1_var"] = jnp.abs(1.0 + 0.1 * jax.random.normal(ks[4], (mid_channels,), jnp.float32))
    p["w2"] = conv_w(ks[5], mid_channels, mid_channels, 3, 3)
    p["bn2_gamma"] = 1.0 + 0.1 * jax.random.normal(ks[6], (mid_channels,), jnp.float32)
    p["bn2_beta"] = 0.1 * jax.random.normal(ks[7], (mid_channels,), jnp.float32)
    p["bn2_mean"] = 0.1 * jax.random.normal(ks[8], (mid_channels,), jnp.float32)
    p["bn2_var"] = jnp.abs(1.0 + 0.1 * jax.random.normal(ks[9], (mid_channels,), jnp.float32))
    kw, kb = jax.random.split(ks[10])
    p["w3"] = conv_w(kw, num_reg_coords_preds, mid_channels, 1, 1)
    p["b3"] = 0.1 * jax.random.normal(kb, (num_reg_coords_preds,), jnp.float32)
    p["bn_eps"] = bn_eps
    return p


def yolov10_regression_head_ref(x_nchw, params):
    x = jnp.transpose(x_nchw, (0, 2, 3, 1))
    dn = ("NHWC", "HWIO", "NHWC")

    def conv_block(x, w_oihw, gamma, beta, mean, var):
        w = jnp.transpose(w_oihw, (2, 3, 1, 0))
        y = jax.lax.conv_general_dilated(x, w, (1, 1), "SAME", dimension_numbers=dn)
        scale = gamma / jnp.sqrt(var + params["bn_eps"])
        y = y * scale + (beta - mean * scale)
        return y * jax.nn.sigmoid(y)

    y = conv_block(x, params["w1"], params["bn1_gamma"], params["bn1_beta"],
                   params["bn1_mean"], params["bn1_var"])
    y = conv_block(y, params["w2"], params["bn2_gamma"], params["bn2_beta"],
                   params["bn2_mean"], params["bn2_var"])
    w3 = jnp.transpose(params["w3"], (2, 3, 1, 0))
    y = jax.lax.conv_general_dilated(y, w3, (1, 1), "SAME", dimension_numbers=dn)
    y = y + params["b3"][None, None, None, :]
    return jnp.transpose(y, (0, 3, 1, 2))


# -----------------------------------------------------------------------------
if __name__ == "__main__":
    batch, in_channels, mid_channels, H, W = 2, 8, 16, 16, 16
    num_reg_preds = 16                        # -> 64 output channels

    key = jax.random.PRNGKey(0)
    kx, kp = jax.random.split(key)
    x = jax.random.normal(kx, (batch, in_channels, H, W), jnp.float32)  # NCHW like PyTorch
    params = make_params(kp, in_channels, mid_channels, num_reg_preds)
    packed = pack_params(params, W)           # one-time host-side weight repacking

    fwd = jax.jit(yolov10_regression_head_pallas)
    out = jax.block_until_ready(fwd(x, packed))
    ref = jax.block_until_ready(yolov10_regression_head_ref(x, params))

    assert out.shape == (batch, 4 * num_reg_preds, H, W), out.shape
    assert jnp.allclose(out, ref, rtol=5e-4, atol=5e-4), float(jnp.max(jnp.abs(out - ref)))
    print("KERNEL_OK")
</pallas_src>

<mosaic_0001>
module attributes {stable_mosaic.version = 11 : i64} {
  func.func @_fused_head_kernel(%arg0: i32, %arg1: memref<1x16x128xf32, #tpu.memory_space<vmem>>, %arg2: memref<3x128x256xf32, #tpu.memory_space<vmem>>, %arg3: memref<1x256xf32, #tpu.memory_space<vmem>>, %arg4: memref<1x256xf32, #tpu.memory_space<vmem>>, %arg5: memref<3x256x256xf32, #tpu.memory_space<vmem>>, %arg6: memref<1x256xf32, #tpu.memory_space<vmem>>, %arg7: memref<1x256xf32, #tpu.memory_space<vmem>>, %arg8: memref<256x1024xf32, #tpu.memory_space<vmem>>, %arg9: memref<1x1024xf32, #tpu.memory_space<vmem>>, %arg10: memref<1x16x1024xf32, #tpu.memory_space<vmem>>, %arg11: memref<18x128xf32, #tpu.memory_space<vmem>>, %arg12: memref<18x256xf32, #tpu.memory_space<vmem>>) attributes {dimension_semantics = [#tpu.dimension_semantics<parallel>], iteration_bounds = array<i64: 2>, scalar_prefetch = 0 : i64, scratch_operands = 2 : i64, tpu.core_type = #tpu.core_type<tc>, window_params = [{transform_indices = @transform_0, window_bounds = array<i64: 1, 16, 128>}, {pipeline_mode = #tpu.pipeline_mode<synchronous>, transform_indices = @transform_1, window_bounds = array<i64: 3, 128, 256>}, {pipeline_mode = #tpu.pipeline_mode<synchronous>, transform_indices = @transform_2, window_bounds = array<i64: 1, 256>}, {pipeline_mode = #tpu.pipeline_mode<synchronous>, transform_indices = @transform_3, window_bounds = array<i64: 1, 256>}, {pipeline_mode = #tpu.pipeline_mode<synchronous>, transform_indices = @transform_4, window_bounds = array<i64: 3, 256, 256>}, {pipeline_mode = #tpu.pipeline_mode<synchronous>, transform_indices = @transform_5, window_bounds = array<i64: 1, 256>}, {pipeline_mode = #tpu.pipeline_mode<synchronous>, transform_indices = @transform_6, window_bounds = array<i64: 1, 256>}, {pipeline_mode = #tpu.pipeline_mode<synchronous>, transform_indices = @transform_7, window_bounds = array<i64: 256, 1024>}, {pipeline_mode = #tpu.pipeline_mode<synchronous>, transform_indices = @transform_8, window_bounds = array<i64: 1, 1024>}, {transform_indices = @transform_9, window_bounds = array<i64: 1, 16, 1024>}]} {
    %cst = arith.constant 0.000000e+00 : f32
    %0 = vector.broadcast %cst : f32 to vector<18x128xf32>
    %c0 = arith.constant 0 : index
    %c0_0 = arith.constant 0 : index
    %1 = vector.load %arg11[%c0, %c0_0] : memref<18x128xf32, #tpu.memory_space<vmem>>, vector<18x128xf32>
    tpu.vector_store %arg11[%c0, %c0_0], %0 {strides = array<i32>} : memref<18x128xf32, #tpu.memory_space<vmem>>, vector<18x128xf32>,
    %c0_1 = arith.constant 0 : index
    %c0_2 = arith.constant 0 : index
    %c0_3 = arith.constant 0 : index
    %2 = vector.load %arg1[%c0_1, %c0_2, %c0_3] : memref<1x16x128xf32, #tpu.memory_space<vmem>>, vector<1x16x128xf32>
    %3 = vector.shape_cast %2 : vector<1x16x128xf32> to vector<16x128xf32>
    %c1 = arith.constant 1 : index
    %c0_4 = arith.constant 0 : index
    %4 = vector.load %arg11[%c1, %c0_4] : memref<18x128xf32, #tpu.memory_space<vmem>>, vector<16x128xf32>
    tpu.vector_store %arg11[%c1, %c0_4], %3 {strides = array<i32>} : memref<18x128xf32, #tpu.memory_space<vmem>>, vector<16x128xf32>,
    %cst_5 = arith.constant 0.000000e+00 : f32
    %5 = vector.broadcast %cst_5 : f32 to vector<16x256xf32>
    %c0_6 = arith.constant 0 : index
    %c0_7 = arith.constant 0 : index
    %6 = vector.load %arg11[%c0_6, %c0_7] : memref<18x128xf32, #tpu.memory_space<vmem>>, vector<16x128xf32>
    %c0_8 = arith.constant 0 : index
    %c0_9 = arith.constant 0 : index
    %c0_10 = arith.constant 0 : index
    %7 = vector.load %arg2[%c0_8, %c0_9, %c0_10] : memref<3x128x256xf32, #tpu.memory_space<vmem>>, vector<1x128x256xf32>
    %8 = vector.shape_cast %7 : vector<1x128x256xf32> to vector<128x256xf32>
    %cst_11 = arith.constant dense<0.000000e+00> : vector<16x256xf32>
    %9 = tpu.matmul %6, %8, %cst_11 {dimension_numbers = #tpu.dot_dimension_numbers<[1], [0], [0], [1], [0, 0, 1, 1], [], []>} : vector<16x128xf32>, vector<128x256xf32>, vector<16x256xf32> -> vector<16x256xf32>
    %10 = arith.addf %5, %9 : vector<16x256xf32>
    %c1_12 = arith.constant 1 : index
    %c0_13 = arith.constant 0 : index
    %11 = vector.load %arg11[%c1_12, %c0_13] : memref<18x128xf32, #tpu.memory_space<vmem>>, vector<16x128xf32>
    %c1_14 = arith.constant 1 : index
    %c0_15 = arith.constant 0 : index
    %c0_16 = arith.constant 0 : index
    %12 = vector.load %arg2[%c1_14, %c0_15, %c0_16] : memref<3x128x256xf32, #tpu.memory_space<vmem>>, vector<1x128x256xf32>
    %13 = vector.shape_cast %12 : vector<1x128x256xf32> to vector<128x256xf32>
    %cst_17 = arith.constant dense<0.000000e+00> : vector<16x256xf32>
    %14 = tpu.matmul %11, %13, %cst_17 {dimension_numbers = #tpu.dot_dimension_numbers<[1], [0], [0], [1], [0, 0, 1, 1], [], []>} : vector<16x128xf32>, vector<128x256xf32>, vector<16x256xf32> -> vector<16x256xf32>
    %15 = arith.addf %10, %14 : vector<16x256xf32>
    %c2 = arith.constant 2 : index
    %c0_18 = arith.constant 0 : index
    %16 = vector.load %arg11[%c2, %c0_18] : memref<18x128xf32, #tpu.memory_space<vmem>>, vector<16x128xf32>
    %c2_19 = arith.constant 2 : index
    %c0_20 = arith.constant 0 : index
    %c0_21 = arith.constant 0 : index
    %17 = vector.load %arg2[%c2_19, %c0_20, %c0_21] : memref<3x128x256xf32, #tpu.memory_space<vmem>>, vector<1x128x256xf32>
    %18 = vector.shape_cast %17 : vector<1x128x256xf32> to vector<128x256xf32>
    %cst_22 = arith.constant dense<0.000000e+00> : vector<16x256xf32>
    %19 = tpu.matmul %16, %18, %cst_22 {dimension_numbers = #tpu.dot_dimension_numbers<[1], [0], [0], [1], [0, 0, 1, 1], [], []>} : vector<16x128xf32>, vector<128x256xf32>, vector<16x256xf32> -> vector<16x256xf32>
    %20 = arith.addf %15, %19 : vector<16x256xf32>
    %c0_23 = arith.constant 0 : index
    %c0_24 = arith.constant 0 : index
    %21 = vector.load %arg3[%c0_23, %c0_24] : memref<1x256xf32, #tpu.memory_space<vmem>>, vector<1x256xf32>
    %22 = vector.broadcast %21 : vector<1x256xf32> to vector<16x256xf32>
    %23 = arith.mulf %20, %22 : vector<16x256xf32>
    %c0_25 = arith.constant 0 : index
    %c0_26 = arith.constant 0 : index
    %24 = vector.load %arg4[%c0_25, %c0_26] : memref<1x256xf32, #tpu.memory_space<vmem>>, vector<1x256xf32>
    %25 = vector.broadcast %24 : vector<1x256xf32> to vector<16x256xf32>
    %26 = arith.addf %23, %25 : vector<16x256xf32>
    %27 = arith.negf %26 : vector<16x256xf32>
    %28 = math.exp %27 : vector<16x256xf32>
    %cst_27 = arith.constant 1.000000e+00 : f32
    %29 = vector.broadcast %cst_27 : f32 to vector<16x256xf32>
    %30 = arith.addf %29, %28 : vector<16x256xf32>
    %31 = arith.divf %29, %30 : vector<16x256xf32>
    %32 = arith.mulf %26, %31 : vector<16x256xf32>
    %cst_28 = arith.constant 0.000000e+00 : f32
    %33 = vector.broadcast %cst_28 : f32 to vector<18x256xf32>
    %c0_29 = arith.constant 0 : index
    %c0_30 = arith.constant 0 : index
    %34 = vector.load %arg12[%c0_29, %c0_30] : memref<18x256xf32, #tpu.memory_space<vmem>>, vector<18x256xf32>
    tpu.vector_store %arg12[%c0_29, %c0_30], %33 {strides = array<i32>} : memref<18x256xf32, #tpu.memory_space<vmem>>, vector<18x256xf32>,
    %c1_31 = arith.constant 1 : index
    %c0_32 = arith.constant 0 : index
    %35 = vector.load %arg12[%c1_31, %c0_32] : memref<18x256xf32, #tpu.memory_space<vmem>>, vector<16x256xf32>
    tpu.vector_store %arg12[%c1_31, %c0_32], %32 {strides = array<i32>} : memref<18x256xf32, #tpu.memory_space<vmem>>, vector<16x256xf32>,
    %cst_33 = arith.constant 0.000000e+00 : f32
    %36 = vector.broadcast %cst_33 : f32 to vector<16x256xf32>
    %c0_34 = arith.constant 0 : index
    %c0_35 = arith.constant 0 : index
    %37 = vector.load %arg12[%c0_34, %c0_35] : memref<18x256xf32, #tpu.memory_space<vmem>>, vector<16x256xf32>
    %c0_36 = arith.constant 0 : index
    %c0_37 = arith.constant 0 : index
    %c0_38 = arith.constant 0 : index
    %38 = vector.load %arg5[%c0_36, %c0_37, %c0_38] : memref<3x256x256xf32, #tpu.memory_space<vmem>>, vector<1x256x256xf32>
    %39 = vector.shape_cast %38 : vector<1x256x256xf32> to vector<256x256xf32>
    %cst_39 = arith.constant dense<0.000000e+00> : vector<16x256xf32>
    %40 = tpu.matmul %37, %39, %cst_39 {dimension_numbers = #tpu.dot_dimension_numbers<[1], [0], [0], [1], [0, 0, 1, 1], [], []>} : vector<16x256xf32>, vector<256x256xf32>, vector<16x256xf32> -> vector<16x256xf32>
    %41 = arith.addf %36, %40 : vector<16x256xf32>
    %c1_40 = arith.constant 1 : index
    %c0_41 = arith.constant 0 : index
    %42 = vector.load %arg12[%c1_40, %c0_41] : memref<18x256xf32, #tpu.memory_space<vmem>>, vector<16x256xf32>
    %c1_42 = arith.constant 1 : index
    %c0_43 = arith.constant 0 : index
    %c0_44 = arith.constant 0 : index
    %43 = vector.load %arg5[%c1_42, %c0_43, %c0_44] : memref<3x256x256xf32, #tpu.memory_space<vmem>>, vector<1x256x256xf32>
    %44 = vector.shape_cast %43 : vector<1x256x256xf32> to vector<256x256xf32>
    %cst_45 = arith.constant dense<0.000000e+00> : vector<16x256xf32>
    %45 = tpu.matmul %42, %44, %cst_45 {dimension_numbers = #tpu.dot_dimension_numbers<[1], [0], [0], [1], [0, 0, 1, 1], [], []>} : vector<16x256xf32>, vector<256x256xf32>, vector<16x256xf32> -> vector<16x256xf32>
    %46 = arith.addf %41, %45 : vector<16x256xf32>
    %c2_46 = arith.constant 2 : index
    %c0_47 = arith.constant 0 : index
    %47 = vector.load %arg12[%c2_46, %c0_47] : memref<18x256xf32, #tpu.memory_space<vmem>>, vector<16x256xf32>
    %c2_48 = arith.constant 2 : index
    %c0_49 = arith.constant 0 : index
    %c0_50 = arith.constant 0 : index
    %48 = vector.load %arg5[%c2_48, %c0_49, %c0_50] : memref<3x256x256xf32, #tpu.memory_space<vmem>>, vector<1x256x256xf32>
    %49 = vector.shape_cast %48 : vector<1x256x256xf32> to vector<256x256xf32>
    %cst_51 = arith.constant dense<0.000000e+00> : vector<16x256xf32>
    %50 = tpu.matmul %47, %49, %cst_51 {dimension_numbers = #tpu.dot_dimension_numbers<[1], [0], [0], [1], [0, 0, 1, 1], [], []>} : vector<16x256xf32>, vector<256x256xf32>, vector<16x256xf32> -> vector<16x256xf32>
    %51 = arith.addf %46, %50 : vector<16x256xf32>
    %c0_52 = arith.constant 0 : index
    %c0_53 = arith.constant 0 : index
    %52 = vector.load %arg6[%c0_52, %c0_53] : memref<1x256xf32, #tpu.memory_space<vmem>>, vector<1x256xf32>
    %53 = vector.broadcast %52 : vector<1x256xf32> to vector<16x256xf32>
    %54 = arith.mulf %51, %53 : vector<16x256xf32>
    %c0_54 = arith.constant 0 : index
    %c0_55 = arith.constant 0 : index
    %55 = vector.load %arg7[%c0_54, %c0_55] : memref<1x256xf32, #tpu.memory_space<vmem>>, vector<1x256xf32>
    %56 = vector.broadcast %55 : vector<1x256xf32> to vector<16x256xf32>
    %57 = arith.addf %54, %56 : vector<16x256xf32>
    %58 = arith.negf %57 : vector<16x256xf32>
    %59 = math.exp %58 : vector<16x256xf32>
    %cst_56 = arith.constant 1.000000e+00 : f32
    %60 = vector.broadcast %cst_56 : f32 to vector<16x256xf32>
    %61 = arith.addf %60, %59 : vector<16x256xf32>
    %62 = arith.divf %60, %61 : vector<16x256xf32>
    %63 = arith.mulf %57, %62 : vector<16x256xf32>
    %c0_57 = arith.constant 0 : index
    %c0_58 = arith.constant 0 : index
    %64 = vector.load %arg8[%c0_57, %c0_58] : memref<256x1024xf32, #tpu.memory_space<vmem>>, vector<256x1024xf32>
    %cst_59 = arith.constant dense<0.000000e+00> : vector<16x1024xf32>
    %65 = tpu.matmul %63, %64, %cst_59 {dimension_numbers = #tpu.dot_dimension_numbers<[1], [0], [0], [1], [0, 0, 1, 1], [], []>} : vector<16x256xf32>, vector<256x1024xf32>, vector<16x1024xf32> -> vector<16x1024xf32>
    %c0_60 = arith.constant 0 : index
    %c0_61 = arith.constant 0 : index
    %66 = vector.load %arg9[%c0_60, %c0_61] : memref<1x1024xf32, #tpu.memory_space<vmem>>, vector<1x1024xf32>
    %67 = vector.broadcast %66 : vector<1x1024xf32> to vector<16x1024xf32>
    %68 = arith.addf %65, %67 : vector<16x1024xf32>
    %69 = vector.shape_cast %68 : vector<16x1024xf32> to vector<1x16x1024xf32>
    %c0_62 = arith.constant 0 : index
    %c0_63 = arith.constant 0 : index
    %c0_64 = arith.constant 0 : index
    %70 = vector.load %arg10[%c0_62, %c0_63, %c0_64] : memref<1x16x1024xf32, #tpu.memory_space<vmem>>, vector<1x16x1024xf32>
    tpu.vector_store %arg10[%c0_62, %c0_63, %c0_64], %69 {strides = array<i32>} : memref<1x16x1024xf32, #tpu.memory_space<vmem>>, vector<1x16x1024xf32>,
    return
  }
  func.func @transform_0(%arg0: i32) -> (i32, i32, i32) {
    %c0_i32 = arith.constant 0 : i32
    %c0_i32_0 = arith.constant 0 : i32
    %c0_i32_1 = arith.constant 0 : i32
    return %arg0, %c0_i32, %c0_i32_0 : i32, i32, i32
  }
  func.func @transform_1(%arg0: i32) -> (i32, i32, i32) {
    %c0_i32 = arith.constant 0 : i32
    %c0_i32_0 = arith.constant 0 : i32
    %c0_i32_1 = arith.constant 0 : i32
    %c0_i32_2 = arith.constant 0 : i32
    return %c0_i32, %c0_i32_0, %c0_i32_1 : i32, i32, i32
  }
  func.func @transform_2(%arg0: i32) -> (i32, i32) {
    %c0_i32 = arith.constant 0 : i32
    %c0_i32_0 = arith.constant 0 : i32
    %c0_i32_1 = arith.constant 0 : i32
    return %c0_i32, %c0_i32_0 : i32, i32
  }
  func.func @transform_3(%arg0: i32) -> (i32, i32) {
    %c0_i32 = arith.constant 0 : i32
    %c0_i32_0 = arith.constant 0 : i32
    %c0_i32_1 = arith.constant 0 : i32
    return %c0_i32, %c0_i32_0 : i32, i32
  }
  func.func @transform_4(%arg0: i32) -> (i32, i32, i32) {
    %c0_i32 = arith.constant 0 : i32
    %c0_i32_0 = arith.constant 0 : i32
    %c0_i32_1 = arith.constant 0 : i32
    %c0_i32_2 = arith.constant 0 : i32
    return %c0_i32, %c0_i32_0, %c0_i32_1 : i32, i32, i32
  }
  func.func @transform_5(%arg0: i32) -> (i32, i32) {
    %c0_i32 = arith.constant 0 : i32
    %c0_i32_0 = arith.constant 0 : i32
    %c0_i32_1 = arith.constant 0 : i32
    return %c0_i32, %c0_i32_0 : i32, i32
  }
  func.func @transform_6(%arg0: i32) -> (i32, i32) {
    %c0_i32 = arith.constant 0 : i32
    %c0_i32_0 = arith.constant 0 : i32
    %c0_i32_1 = arith.constant 0 : i32
    return %c0_i32, %c0_i32_0 : i32, i32
  }
  func.func @transform_7(%arg0: i32) -> (i32, i32) {
    %c0_i32 = arith.constant 0 : i32
    %c0_i32_0 = arith.constant 0 : i32
    %c0_i32_1 = arith.constant 0 : i32
    return %c0_i32, %c0_i32_0 : i32, i32
  }
  func.func @transform_8(%arg0: i32) -> (i32, i32) {
    %c0_i32 = arith.constant 0 : i32
    %c0_i32_0 = arith.constant 0 : i32
    %c0_i32_1 = arith.constant 0 : i32
    return %c0_i32, %c0_i32_0 : i32, i32
  }
  func.func @transform_9(%arg0: i32) -> (i32, i32, i32) {
    %c0_i32 = arith.constant 0 : i32
    %c0_i32_0 = arith.constant 0 : i32
    %c0_i32_1 = arith.constant 0 : i32
    return %arg0, %c0_i32, %c0_i32_0 : i32, i32, i32
  }
}

</mosaic_0001>

<llo_original>
// kernel: yolov10_regression_head_pallas.1
$region0: #{yolov10_regression_head_pallas.1}
  #allocation0 [shape = 'u32[]', space=smem, size = 0x4, offset = 0x4, fixed_abs, tag = 'smem constant byte address 0x4 - core index']
  #allocation1 [shape = 'u32[144,128]{1,0:T(1,128)}', space=vmem, size = 0x12000, scoped, tag = 'internal scratch']
  #allocation2 [shape = 'f32[18,128]{1,0:T(8,128)}', space=vmem, size = 0x3000, scoped, tag = 'scratch operand']
  #allocation3 [shape = 'f32[18,256]{1,0:T(8,128)}', space=vmem, size = 0x6000, scoped, tag = 'scratch operand']
  %s0 = inlined_call_operand.vmem [shape: f32[2,16,128], index: 0, kind: input, shape index: {}]
  %s1 = inlined_call_operand.vmem [shape: f32[3,128,256], index: 1, kind: input, shape index: {}]
  %s2 = inlined_call_operand.vmem [shape: f32[1,256], index: 2, kind: input, shape index: {}]
  %s3 = inlined_call_operand.vmem [shape: f32[1,256], index: 3, kind: input, shape index: {}]
  %s4 = inlined_call_operand.hbm [shape: f32[3,256,256], index: 4, kind: input, shape index: {}]
  %s5 = inlined_call_operand.vmem [shape: f32[1,256], index: 5, kind: input, shape index: {}]
  %s6 = inlined_call_operand.vmem [shape: f32[1,256], index: 6, kind: input, shape index: {}]
  %s7 = inlined_call_operand.hbm [shape: f32[256,1024], index: 7, kind: input, shape index: {}]
  %s8 = inlined_call_operand.vmem [shape: f32[1,1024], index: 8, kind: input, shape index: {}]
  %s9 = inlined_call_operand.vmem [shape: f32[2,16,1024], index: 9, kind: output, shape index: {}]
  %s10 = sld [smem:[#allocation0]]
  $region77: #{yolov10_regression_head_pallas.1} parent=0
    _
  %s12 = ssub.s32 1, %s10
  %s13 = scalar_select 0, %s12, %s10
  $region1: #{yolov10_regression_head_pallas.1} parent=0
    #allocation4 [shape = 'u8[786432]{0}', space=vmem, size = 0xc0000, scoped, tag = 'input window, operand 4, single buffered']
    #allocation5 [shape = 's32[2]{0}', space=sflag, size = 0x8, scoped, tag = 'scoped memory for yolov10_regression_head_pallas.1']
    #allocation6 [shape = 'u8[1048576]{0}', space=vmem, size = 0x100000, scoped, tag = 'input window, operand 7, single buffered']
    #allocation7 [shape = 's32[1]{0}', space=sflag, size = 0x4, scoped, tag = 'scoped memory for yolov10_regression_head_pallas.1']
    %14 = vsyncpa [#allocation5], 0
    %15 = vsyncpa [#allocation7], 0
    loop: start=0, step=1, limit=4
    $region2: #{yolov10_regression_head_pallas.1} parent=1 // loop_pre_header
      _
    $region3: #{yolov10_regression_head_pallas.1} parent=1 // loop_header
      %s17 = sphi 0, %s21
      %p18 = scmp.ge.s32.totalorder %s17, 4
      %s27 = sphi 0, %s29
      %s30 = sphi 0, %s27
      %s31 = sphi 0, %s30
      %s47 = sphi 0, %s31
      %s51 = sphi 0, %s51
      %s53 = sphi 0, %s51
      %s54 = sphi 0, %s53
      %s68 = sphi 0, %s54
      %s72 = sphi 0, %s72
      %s74 = sphi 0, %s72
      %s75 = sphi 0, %s74
      %s89 = sphi 0, %s75
      %s93 = sphi 0, %s93
      %s95 = sphi 0, %s93
      %s96 = sphi 0, %s95
      %s110 = sphi 0, %s96
      %s114 = sphi 0, %s114
      %s116 = sphi 0, %s114
      %s117 = sphi 0, %s116
      %s131 = sphi 0, %s117
      %s135 = sphi 0, %s135
      %s137 = sphi 0, %s135
      %s138 = sphi 0, %s137
      %s152 = sphi 0, %s138
      %s156 = sphi 0, %s156
      %s158 = sphi 0, %s156
      %s159 = sphi 0, %s158
      %s173 = sphi 0, %s159
      %s177 = sphi 0, %s177
      %s179 = sphi 0, %s177
      %s180 = sphi 0, %s179
      %s194 = sphi 0, %s180
      %s198 = sphi 0, %s198
      %s200 = sphi 0, %s198
      %s201 = sphi 0, %s200
      %s215 = sphi 0, %s201
      %s221 = sphi 0, %s223
      %s224 = sphi 0, %s221
      %s225 = sphi 0, %s224
      %s241 = sphi 0, %s225
    $region4: #{yolov10_regression_head_pallas.1} parent=1 // loop_header_branch
      %20 = sbr.rel (%p18) target = $region8
    $region5: #{yolov10_regression_head_pallas.1} parent=1 // loop_body
      %s22 = ssub.s32 %s17, 1
      %s23 = ssub.s32 %s17, 2
      %s24 = sadd.s32 %s17, 1
      %s25 = ssub.s32 %s17, %s24
      %p26 = scmp.eq.s32.totalorder %s25, 0
      %s28 = sadd.s32 %s27, 1
      %s29 = scalar_select %p26, %s27, %s28
      %p32 = pneg %p26
      %p33 = scmp.eq.s32.totalorder %s17, 1
      %p34 = por %p32, %p33
      %p35 = scmp.ne.s32.totalorder %s27, %s30
      %p36 = scmp.eq.s32.totalorder %s17, 0
      %p37 = por %p35, %p36
      %p38 = scmp.ne.s32.totalorder %s27, %s30
      %p39 = scmp.eq.s32.totalorder %s22, 1
      %p40 = por %p38, %p39
      %p41 = scmp.ne.s32.totalorder %s30, %s31
      %p42 = scmp.eq.s32.totalorder %s22, 0
      %p43 = por %p41, %p42
      %p44 = scmp.ne.s32.totalorder %s30, %s31
      %p45 = scmp.eq.s32.totalorder %s23, 1
      %p46 = por %p44, %p45
      %p48 = scmp.ne.s32.totalorder %s31, %s47
      %p49 = scmp.eq.s32.totalorder %s23, 0
      %p50 = por %p48, %p49
      %s52 = sadd.s32 %s51, 1
      %p55 = scmp.eq.s32.totalorder %s17, 1
      %p56 = scmp.ne.s32.totalorder %s51, %s53
      %p57 = scmp.eq.s32.totalorder %s17, 0
      %p58 = por %p56, %p57
      %p59 = scmp.ne.s32.totalorder %s51, %s53
      %p60 = scmp.eq.s32.totalorder %s22, 1
      %p61 = por %p59, %p60
      %p62 = scmp.ne.s32.totalorder %s53, %s54
      %p63 = scmp.eq.s32.totalorder %s22, 0
      %p64 = por %p62, %p63
      %p65 = scmp.ne.s32.totalorder %s53, %s54
      %p66 = scmp.eq.s32.totalorder %s23, 1
      %p67 = por %p65, %p66
      %p69 = scmp.ne.s32.totalorder %s54, %s68
      %p70 = scmp.eq.s32.totalorder %s23, 0
      %p71 = por %p69, %p70
      %s73 = sadd.s32 %s72, 1
      %p76 = scmp.eq.s32.totalorder %s17, 1
      %p77 = scmp.ne.s32.totalorder %s72, %s74
      %p78 = scmp.eq.s32.totalorder %s17, 0
      %p79 = por %p77, %p78
      %p80 = scmp.ne.s32.totalorder %s72, %s74
      %p81 = scmp.eq.s32.totalorder %s22, 1
      %p82 = por %p80, %p81
      %p83 = scmp.ne.s32.totalorder %s74, %s75
      %p84 = scmp.eq.s32.totalorder %s22, 0
      %p85 = por %p83, %p84
      %p86 = scmp.ne.s32.totalorder %s74, %s75
      %p87 = scmp.eq.s32.totalorder %s23, 1
      %p88 = por %p86, %p87
      %p90 = scmp.ne.s32.totalorder %s75, %s89
      %p91 = scmp.eq.s32.totalorder %s23, 0
      %p92 = por %p90, %p91
      %s94 = sadd.s32 %s93, 1
      %p97 = scmp.eq.s32.totalorder %s17, 1
      %p98 = scmp.ne.s32.totalorder %s93, %s95
      %p99 = scmp.eq.s32.totalorder %s17, 0
      %p100 = por %p98, %p99
      %p101 = scmp.ne.s32.totalorder %s93, %s95
      %p102 = scmp.eq.s32.totalorder %s22, 1
      %p103 = por %p101, %p102
      %p104 = scmp.ne.s32.totalorder %s95, %s96
      %p105 = scmp.eq.s32.totalorder %s22, 0
      %p106 = por %p104, %p105
      %p107 = scmp.ne.s32.totalorder %s95, %s96
      %p108 = scmp.eq.s32.totalorder %s23, 1
      %p109 = por %p107, %p108
      %p111 = scmp.ne.s32.totalorder %s96, %s110
      %p112 = scmp.eq.s32.totalorder %s23, 0
      %p113 = por %p111, %p112
      %s115 = sadd.s32 %s114, 1
      %p118 = scmp.eq.s32.totalorder %s17, 1
      %p119 = scmp.ne.s32.totalorder %s114, %s116
      %p120 = scmp.eq.s32.totalorder %s17, 0
      %p121 = por %p119, %p120
      %p122 = scmp.ne.s32.totalorder %s114, %s116
      %p123 = scmp.eq.s32.totalorder %s22, 1
      %p124 = por %p122, %p123
      %p125 = scmp.ne.s32.totalorder %s116, %s117
      %p126 = scmp.eq.s32.totalorder %s22, 0
      %p127 = por %p125, %p126
      %p128 = scmp.ne.s32.totalorder %s116, %s117
      %p129 = scmp.eq.s32.totalorder %s23, 1
      %p130 = por %p128, %p129
      %p132 = scmp.ne.s32.totalorder %s117, %s131
      %p133 = scmp.eq.s32.totalorder %s23, 0
      %p134 = por %p132, %p133
      %s136 = sadd.s32 %s135, 1
      %p139 = scmp.eq.s32.totalorder %s17, 1
      %p140 = scmp.ne.s32.totalorder %s135, %s137
      %p141 = scmp.eq.s32.totalorder %s17, 0
      %p142 = por %p140, %p141
      %p143 = scmp.ne.s32.totalorder %s135, %s137
      %p144 = scmp.eq.s32.totalorder %s22, 1
      %p145 = por %p143, %p144
      %p146 = scmp.ne.s32.totalorder %s137, %s138
      %p147 = scmp.eq.s32.totalorder %s22, 0
      %p148 = por %p146, %p147
      %p149 = scmp.ne.s32.totalorder %s137, %s138
      %p150 = scmp.eq.s32.totalorder %s23, 1
      %p151 = por %p149, %p150
      %p153 = scmp.ne.s32.totalorder %s138, %s152
      %p154 = scmp.eq.s32.totalorder %s23, 0
      %p155 = por %p153, %p154
      %s157 = sadd.s32 %s156, 1
      %p160 = scmp.eq.s32.totalorder %s17, 1
      %p161 = scmp.ne.s32.totalorder %s156, %s158
      %p162 = scmp.eq.s32.totalorder %s17, 0
      %p163 = por %p161, %p162
      %p164 = scmp.ne.s32.totalorder %s156, %s158
      %p165 = scmp.eq.s32.totalorder %s22, 1
      %p166 = por %p164, %p165
      %p167 = scmp.ne.s32.totalorder %s158, %s159
      %p168 = scmp.eq.s32.totalorder %s22, 0
      %p169 = por %p167, %p168
      %p170 = scmp.ne.s32.totalorder %s158, %s159
      %p171 = scmp.eq.s32.totalorder %s23, 1
      %p172 = por %p170, %p171
      %p174 = scmp.ne.s32.totalorder %s159, %s173
      %p175 = scmp.eq.s32.totalorder %s23, 0
      %p176 = por %p174, %p175
      %s178 = sadd.s32 %s177, 1
      %p181 = scmp.eq.s32.totalorder %s17, 1
      %p182 = scmp.ne.s32.totalorder %s177, %s179
      %p183 = scmp.eq.s32.totalorder %s17, 0
      %p184 = por %p182, %p183
      %p185 = scmp.ne.s32.totalorder %s177, %s179
      %p186 = scmp.eq.s32.totalorder %s22, 1
      %p187 = por %p185, %p186
      %p188 = scmp.ne.s32.totalorder %s179, %s180
      %p189 = scmp.eq.s32.totalorder %s22, 0
      %p190 = por %p188, %p189
      %p191 = scmp.ne.s32.totalorder %s179, %s180
      %p192 = scmp.eq.s32.totalorder %s23, 1
      %p193 = por %p191, %p192
      %p195 = scmp.ne.s32.totalorder %s180, %s194
      %p196 = scmp.eq.s32.totalorder %s23, 0
      %p197 = por %p195, %p196
      %s199 = sadd.s32 %s198, 1
      %p202 = scmp.eq.s32.totalorder %s17, 1
      %p203 = scmp.ne.s32.totalorder %s198, %s200
      %p204 = scmp.eq.s32.totalorder %s17, 0
      %p205 = por %p203, %p204
      %p206 = scmp.ne.s32.totalorder %s198, %s200
      %p207 = scmp.eq.s32.totalorder %s22, 1
      %p208 = por %p206, %p207
      %p209 = scmp.ne.s32.totalorder %s200, %s201
      %p210 = scmp.eq.s32.totalorder %s22, 0
      %p211 = por %p209, %p210
      %p212 = scmp.ne.s32.totalorder %s200, %s201
      %p213 = scmp.eq.s32.totalorder %s23, 1
      %p214 = por %p212, %p213
      %p216 = scmp.ne.s32.totalorder %s201, %s215
      %p217 = scmp.eq.s32.totalorder %s23, 0
      %p218 = por %p216, %p217
      %s219 = ssub.s32 %s17, %s24
      %p220 = scmp.eq.s32.totalorder %s219, 0
      %s222 = sadd.s32 %s221, 1
      %s223 = scalar_select %p220, %s221, %s222
      %p226 = pneg %p220
      %p227 = scmp.eq.s32.totalorder %s17, 1
      %p228 = por %p226, %p227
      %p229 = scmp.ne.s32.totalorder %s221, %s224
      %p230 = scmp.eq.s32.totalorder %s17, 0
      %p231 = por %p229, %p230
      %p232 = scmp.ne.s32.totalorder %s221, %s224
      %p233 = scmp.eq.s32.totalorder %s22, 1
      %p234 = por %p232, %p233
      %p235 = scmp.ne.s32.totalorder %s224, %s225
      %p236 = scmp.eq.s32.totalorder %s22, 0
      %p237 = por %p235, %p236
      %p238 = scmp.ne.s32.totalorder %s224, %s225
      %p239 = scmp.eq.s32.totalorder %s23, 1
      %p240 = por %p238, %p239
      %p242 = scmp.ne.s32.totalorder %s225, %s241
      %p243 = scmp.eq.s32.totalorder %s23, 0
      %p244 = por %p242, %p243
      %p245 = scmp.le.s32.totalorder 1, %s17
      %p246 = scmp.lt.s32.totalorder %s17, 3
      %p247 = pnand %p245, %p246
      %p248 = pneg %p247
      // Predicated region
      $region9: #{yolov10_regression_head_pallas.1} parent=5 // pred_check
        _
      $region10: #{yolov10_regression_head_pallas.1} parent=5 // pred_check_branch
        %250 = sbr.rel (%p247) target = $region12
      $region11: #{yolov10_regression_head_pallas.1} parent=5 // pred_region
        %s251 = ssub.s32 %s17, 1
        // Predicated region
        $region13: #{yolov10_regression_head_pallas.1} parent=11 // pred_check
          %p252 = pneg %p64
        $region14: #{yolov10_regression_head_pallas.1} parent=11 // pred_check_branch
          %254 = sbr.rel (%p252) target = $region16
        $region15: #{yolov10_regression_head_pallas.1} parent=11 // pred_region
          _
        $region16: #{yolov10_regression_head_pallas.1} parent=11 // pred_fallthru
          _
        // Predicated region
        $region17: #{yolov10_regression_head_pallas.1} parent=11 // pred_check
          %p255 = pneg %p85
        $region18: #{yolov10_regression_head_pallas.1} parent=11 // pred_check_branch
          %257 = sbr.rel (%p255) target = $region20
        $region19: #{yolov10_regression_head_pallas.1} parent=11 // pred_region
          _
        $region20: #{yolov10_regression_head_pallas.1} parent=11 // pred_fallthru
          _
        // Predicated region
        $region21: #{yolov10_regression_head_pallas.1} parent=11 // pred_check
          %p258 = pneg %p106
        $region22: #{yolov10_regression_head_pallas.1} parent=11 // pred_check_branch
          %260 = sbr.rel (%p258) target = $region24
        $region23: #{yolov10_regression_head_pallas.1} parent=11 // pred_region
          _
        $region24: #{yolov10_regression_head_pallas.1} parent=11 // pred_fallthru
          _
        // Predicated region
        $region25: #{yolov10_regression_head_pallas.1} parent=11 // pred_check
          %p261 = pneg %p127
        $region26: #{yolov10_regression_head_pallas.1} parent=11 // pred_check_branch
          %263 = sbr.rel (%p261) target = $region28
        $region27: #{yolov10_regression_head_pallas.1} parent=11 // pred_region
          %s265 = ssub.s32 24576, 24576
          %266 = vsyncadd [#allocation5], %s265
          %s267 = sshll.u32 [#allocation4], 4
          %s268 = int_to_ptr.vmem [resolvable:$true] %s267
          %273 = dma.hbm_to_vmem [thread:$0]  %s4, 24576, %s268, [#allocation5], 256, 256, 16
        $region28: #{yolov10_regression_head_pallas.1} parent=11 // pred_fallthru
          _
        // Predicated region
        $region29: #{yolov10_regression_head_pallas.1} parent=11 // pred_check
          %p274 = pneg %p148
        $region30: #{yolov10_regression_head_pallas.1} parent=11 // pred_check_branch
          %276 = sbr.rel (%p274) target = $region32
        $region31: #{yolov10_regression_head_pallas.1} parent=11 // pred_region
          _
        $region32: #{yolov10_regression_head_pallas.1} parent=11 // pred_fallthru
          _
        // Predicated region
        $region33: #{yolov10_regression_head_pallas.1} parent=11 // pred_check
          %p277 = pneg %p169
        $region34: #{yolov10_regression_head_pallas.1} parent=11 // pred_check_branch
          %279 = sbr.rel (%p277) target = $region36
        $region35: #{yolov10_regression_head_pallas.1} parent=11 // pred_region
          _
        $region36: #{yolov10_regression_head_pallas.1} parent=11 // pred_fallthru
          _
        // Predicated region
        $region37: #{yolov10_regression_head_pallas.1} parent=11 // pred_check
          %p280 = pneg %p190
        $region38: #{yolov10_regression_head_pallas.1} parent=11 // pred_check_branch
          %282 = sbr.rel (%p280) target = $region40
        $region39: #{yolov10_regression_head_pallas.1} parent=11 // pred_region
          %s284 = ssub.s32 32768, 32768
          %285 = vsyncadd [#allocation7], %s284
          %s286 = sshll.u32 [#allocation6], 4
          %s287 = int_to_ptr.vmem [resolvable:$true] %s286
          %292 = dma.hbm_to_vmem [thread:$0]  %s7, 32768, %s287, [#allocation7], 1024, 1024, 64
        $region40: #{yolov10_regression_head_pallas.1} parent=11 // pred_fallthru
          _
        // Predicated region
        $region41: #{yolov10_regression_head_pallas.1} parent=11 // pred_check
          %p293 = pneg %p211
        $region42: #{yolov10_regression_head_pallas.1} parent=11 // pred_check_branch
          %295 = sbr.rel (%p293) target = $region44
        $region43: #{yolov10_regression_head_pallas.1} parent=11 // pred_region
          _
        $region44: #{yolov10_regression_head_pallas.1} parent=11 // pred_fallthru
          _
      $region12: #{yolov10_regression_head_pallas.1} parent=5 // pred_fallthru
        _
      %p296 = scmp.lt.s32.totalorder %s17, 2
      // Predicated region
      $region45: #{yolov10_regression_head_pallas.1} parent=5 // pred_check
        %p297 = pneg %p296
      $region46: #{yolov10_regression_head_pallas.1} parent=5 // pred_check_branch
        %299 = sbr.rel (%p297) target = $region48
      $region47: #{yolov10_regression_head_pallas.1} parent=5 // pred_region
        // Predicated region
        $region49: #{yolov10_regression_head_pallas.1} parent=47 // pred_check
          %p300 = pneg %p37
        $region50: #{yolov10_regression_head_pallas.1} parent=47 // pred_check_branch
          %302 = sbr.rel (%p300) target = $region52
        $region51: #{yolov10_regression_head_pallas.1} parent=47 // pred_region
          %p303 = scmp.lt.s32.totalorder %s17, 1
          %s304 = scalar_select %p303, %s17, 1
          %s305 = smul.addr %s304, 2
          %s306 = smul.addr %s305, 8
          %s307 = scalar_lea.vmem %s0, %s306
        $region52: #{yolov10_regression_head_pallas.1} parent=47 // pred_fallthru
          _
      $region48: #{yolov10_regression_head_pallas.1} parent=5 // pred_fallthru
        _
      %p308 = scmp.le.s32.totalorder 1, %s17
      %p309 = scmp.lt.s32.totalorder %s17, 3
      %p310 = pnand %p308, %p309
      %p311 = pneg %p310
      // Predicated region
      $region53: #{yolov10_regression_head_pallas.1} parent=5 // pred_check
        _
      $region54: #{yolov10_regression_head_pallas.1} parent=5 // pred_check_branch
        %313 = sbr.rel (%p310) target = $region56
      $region55: #{yolov10_regression_head_pallas.1} parent=5 // pred_region
        %s314 = ssub.s32 %s17, 1
        // Predicated region
        $region57: #{yolov10_regression_head_pallas.1} parent=55 // pred_check
          %p315 = pneg %p127
        $region58: #{yolov10_regression_head_pallas.1} parent=55 // pred_check_branch
          %317 = sbr.rel (%p315) target = $region60
        $region59: #{yolov10_regression_head_pallas.1} parent=55 // pred_region
          %318 = dma.done [#allocation5], 24576
        $region60: #{yolov10_regression_head_pallas.1} parent=55 // pred_fallthru
          _
        // Predicated region
        $region61: #{yolov10_regression_head_pallas.1} parent=55 // pred_check
          %p319 = pneg %p190
        $region62: #{yolov10_regression_head_pallas.1} parent=55 // pred_check_branch
          %321 = sbr.rel (%p319) target = $region64
        $region63: #{yolov10_regression_head_pallas.1} parent=55 // pred_region
          %322 = dma.done [#allocation7], 32768
        $region64: #{yolov10_regression_head_pallas.1} parent=55 // pred_fallthru
          _
        %p323 = scmp.lt.s32.totalorder %s22, 1
        %s324 = scalar_select %p323, %s22, 1
        %s325 = smul.addr %s324, 2
        %s326 = smul.addr %s325, 8
        %s327 = scalar_lea.vmem %s0, %s326
        %p328 = pneg %p43
        %p329 = pneg %p40
        %p330 = pneg %p64
        %p331 = pneg %p61
        %p332 = pneg %p85
        %p333 = pneg %p82
        %p334 = pneg %p106
        %p335 = pneg %p103
        %p336 = pneg %p127
        %p337 = pneg %p124
        %p338 = pneg %p148
        %p339 = pneg %p145
        %p340 = pneg %p169
        %p341 = pneg %p166
        %p342 = pneg %p190
        %p343 = pneg %p187
        %p344 = pneg %p211
        %p345 = pneg %p208
        %p346 = pneg %p237
        %p347 = pneg %p234
        %p348 = scmp.lt.s32.totalorder %s22, 1
        %s349 = scalar_select %p348, %s22, 1
        %s350 = smul.addr %s349, 16
        %s351 = smul.addr %s350, 8
        %s352 = scalar_lea.vmem %s9, %s351
        %p353 = scmp.lt.s32.totalorder %s22, 1
        %s354 = scalar_select %p353, %s22, 1
        %s355 = smul.addr %s354, 2
        %s356 = smul.addr %s355, 8
        %s357 = scalar_lea.vmem %s0, %s356
        %p358 = scmp.lt.s32.totalorder %s22, 1
        %s359 = scalar_select %p358, %s22, 1
        %s360 = smul.addr %s359, 16
        %s361 = smul.addr %s360, 8
        %s362 = scalar_lea.vmem %s9, %s361
        %363 = vst [vmem:[#allocation2] sm:$0xff] 0.0
        %364 = vst [vmem:[#allocation2 + $0x8] sm:$0xff] 0.0
        %365 = vst [vmem:[#allocation2 + $0x10] sm:$0x3] 0.0
        %v366 = vld [vmem:[%s357] sm:$0xff]
        %v367 = vld [vmem:[%s357 + $0x8] sm:$0xff]
        %368 = vst [vmem:[#allocation2 + $0x1] sm:$0xff] %v366
        %369 = vst [vmem:[#allocation2 + $0x9] sm:$0xff] %v367
        %v370 = vld [vmem:[#allocation2] sm:$0xff]
        %v371 = vld [vmem:[#allocation2 + $0x8] sm:$0xff]
        %v372 = vld [vmem:[%s1] sm:$0xff]
        %v373 = vld [vmem:[%s1 + $0x8] sm:$0xff]
        %v374 = vld [vmem:[%s1 + $0x10] sm:$0xff]
        %v375 = vld [vmem:[%s1 + $0x18] sm:$0xff]
        %v376 = vld [vmem:[%s1 + $0x20] sm:$0xff]
        %v377 = vld [vmem:[%s1 + $0x28] sm:$0xff]
        %v378 = vld [vmem:[%s1 + $0x30] sm:$0xff]
        %v379 = vld [vmem:[%s1 + $0x38] sm:$0xff]
        %v380 = vld [vmem:[%s1 + $0x40] sm:$0xff]
        %v381 = vld [vmem:[%s1 + $0x48] sm:$0xff]
        %v382 = vld [vmem:[%s1 + $0x50] sm:$0xff]
        %v383 = vld [vmem:[%s1 + $0x58] sm:$0xff]
        %v384 = vld [vmem:[%s1 + $0x60] sm:$0xff]
        %v385 = vld [vmem:[%s1 + $0x68] sm:$0xff]
        %v386 = vld [vmem:[%s1 + $0x70] sm:$0xff]
        %v387 = vld [vmem:[%s1 + $0x78] sm:$0xff]
        %v388 = vld [vmem:[%s1 + $0x80] sm:$0xff]
        %v389 = vld [vmem:[%s1 + $0x88] sm:$0xff]
        %v390 = vld [vmem:[%s1 + $0x90] sm:$0xff]
        %v391 = vld [vmem:[%s1 + $0x98] sm:$0xff]
        %v392 = vld [vmem:[%s1 + $0xa0] sm:$0xff]
        %v393 = vld [vmem:[%s1 + $0xa8] sm:$0xff]
        %v394 = vld [vmem:[%s1 + $0xb0] sm:$0xff]
        %v395 = vld [vmem:[%s1 + $0xb8] sm:$0xff]
        %v396 = vld [vmem:[%s1 + $0xc0] sm:$0xff]
        %v397 = vld [vmem:[%s1 + $0xc8] sm:$0xff]
        %v398 = vld [vmem:[%s1 + $0xd0] sm:$0xff]
        %v399 = vld [vmem:[%s1 + $0xd8] sm:$0xff]
        %v400 = vld [vmem:[%s1 + $0xe0] sm:$0xff]
        %v401 = vld [vmem:[%s1 + $0xe8] sm:$0xff]
        %v402 = vld [vmem:[%s1 + $0xf0] sm:$0xff]
        %v403 = vld [vmem:[%s1 + $0xf8] sm:$0xff]
        %v404 = vld [vmem:[#allocation2 + $0x1] sm:$0xff]
        %v405 = vld [vmem:[#allocation2 + $0x9] sm:$0xff]
        %s406 = scalar_lea.vmem %s1, 256
        %v407 = vld [vmem:[%s406] sm:$0xff]
        %v408 = vld [vmem:[%s406 + $0x8] sm:$0xff]
        %v409 = vld [vmem:[%s406 + $0x10] sm:$0xff]
        %v410 = vld [vmem:[%s406 + $0x18] sm:$0xff]
        %v411 = vld [vmem:[%s406 + $0x20] sm:$0xff]
        %v412 = vld [vmem:[%s406 + $0x28] sm:$0xff]
        %v413 = vld [vmem:[%s406 + $0x30] sm:$0xff]
        %v414 = vld [vmem:[%s406 + $0x38] sm:$0xff]
        %v415 = vld [vmem:[%s406 + $0x40] sm:$0xff]
        %v416 = vld [vmem:[%s406 + $0x48] sm:$0xff]
        %v417 = vld [vmem:[%s406 + $0x50] sm:$0xff]
        %v418 = vld [vmem:[%s406 + $0x58] sm:$0xff]
        %v419 = vld [vmem:[%s406 + $0x60] sm:$0xff]
        %v420 = vld [vmem:[%s406 + $0x68] sm:$0xff]
        %v421 = vld [vmem:[%s406 + $0x70] sm:$0xff]
        %v422 = vld [vmem:[%s406 + $0x78] sm:$0xff]
        %v423 = vld [vmem:[%s406 + $0x80] sm:$0xff]
        %v424 = vld [vmem:[%s406 + $0x88] sm:$0xff]
        %v425 = vld [vmem:[%s406 + $0x90] sm:$0xff]
        %v426 = vld [vmem:[%s406 + $0x98] sm:$0xff]
        %v427 = vld [vmem:[%s406 + $0xa0] sm:$0xff]
        %v428 = vld [vmem:[%s406 + $0xa8] sm:$0xff]
        %v429 = vld [vmem:[%s406 + $0xb0] sm:$0xff]
        %v430 = vld [vmem:[%s406 + $0xb8] sm:$0xff]
        %v431 = vld [vmem:[%s406 + $0xc0] sm:$0xff]
        %v432 = vld [vmem:[%s406 + $0xc8] sm:$0xff]
        %v433 = vld [vmem:[%s406 + $0xd0] sm:$0xff]
        %v434 = vld [vmem:[%s406 + $0xd8] sm:$0xff]
        %v435 = vld [vmem:[%s406 + $0xe0] sm:$0xff]
        %v436 = vld [vmem:[%s406 + $0xe8] sm:$0xff]
        %v437 = vld [vmem:[%s406 + $0xf0] sm:$0xff]
        %v438 = vld [vmem:[%s406 + $0xf8] sm:$0xff]
        %439 = vmatprep.subr.mxu0 %v408
        %440 = vmatpush1.msra.mxu0 %v407
        %441 = vmatprep.subr.mxu0 %v410
        %442 = vmatpush1.msra.mxu0 %v409
        %443 = vmatprep.subr.mxu0 %v412
        %444 = vmatpush1.msra.mxu0 %v411
        %445 = vmatprep.subr.mxu0 %v414
        %446 = vmatpush1.msra.mxu0 %v413
        %447 = vmatprep.subr.mxu0 %v416
        %448 = vmatpush1.msra.mxu0 %v415
        %449 = vmatprep.subr.mxu0 %v418
        %450 = vmatpush1.msra.mxu0 %v417
        %451 = vmatprep.subr.mxu0 %v420
        %452 = vmatpush1.msra.mxu0 %v419
        %453 = vmatprep.subr.mxu0 %v422
        %454 = vmatpush1.msra.mxu0 %v421
        %455 = vmatprep.subr.mxu0 %v424
        %456 = vmatpush1.msra.mxu0 %v423
        %457 = vmatprep.subr.mxu0 %v426
        %458 = vmatpush1.msra.mxu0 %v425
        %459 = vmatprep.subr.mxu0 %v428
        %460 = vmatpush1.msra.mxu0 %v427
        %461 = vmatprep.subr.mxu0 %v430
        %462 = vmatpush1.msra.mxu0 %v429
        %463 = vmatprep.subr.mxu0 %v432
        %464 = vmatpush1.msra.mxu0 %v431
        %465 = vmatprep.subr.mxu0 %v434
        %466 = vmatpush1.msra.mxu0 %v433
        %467 = vmatprep.subr.mxu0 %v436
        %468 = vmatpush1.msra.mxu0 %v435
        %469 = vmatprep.subr.mxu0 %v438
        %470 = vmatpush1.msra.mxu0 %v437
        %471 = vmatprep.subr.mxu0 0.0
        %472 = vmatpush1.msra.mxu0 0.0
        %473 = vmatprep.subr.mxu0 0.0
        %474 = vmatpush1.msra.mxu0 0.0
        %475 = vmatprep.subr.mxu0 0.0
        %476 = vmatpush1.msra.mxu0 0.0
        %477 = vmatprep.subr.mxu0 0.0
        %478 = vmatpush1.msra.mxu0 0.0
        %479 = vmatprep.subr.mxu0 0.0
        %480 = vmatpush1.msra.mxu0 0.0
        %481 = vmatprep.subr.mxu0 0.0
        %482 = vmatpush1.msra.mxu0 0.0
        %483 = vmatprep.subr.mxu0 0.0
        %484 = vmatpush1.msra.mxu0 0.0
        %485 = vmatprep.subr.mxu0 0.0
        %486 = vmatpush1.msra.mxu0 0.0
        %487 = vmatprep.subr.mxu0 0.0
        %488 = vmatpush1.msra.mxu0 0.0
        %489 = vmatprep.subr.mxu0 0.0
        %490 = vmatpush1.msra.mxu0 0.0
        %491 = vmatprep.subr.mxu0 0.0
        %492 = vmatpush1.msra.mxu0 0.0
        %493 = vmatprep.subr.mxu0 0.0
        %494 = vmatpush1.msra.mxu0 0.0
        %495 = vmatprep.subr.mxu0 0.0
        %496 = vmatpush1.msra.mxu0 0.0
        %497 = vmatprep.subr.mxu0 0.0
        %498 = vmatpush1.msra.mxu0 0.0
        %499 = vmatprep.subr.mxu0 0.0
        %500 = vmatpush1.msra.mxu0 0.0
        %501 = vmatprep.subr.mxu0 0.0
        %502 = vmatpush1.msra.mxu0 0.0
        %503 = vmatprep.mubr.f32.mxu0 0.0
        %504 = vmatmul.mubr.f32.gmra.mrb[0].mxu0 %v404
        %v505 = vpop.f32.mrb[0].mxu0
        %v506 = vadd.f32 0.0, %v505
        %v507 = vpop.f32.mrb[0].mxu0
        %v508 = vadd.f32 0.0, %v507
        %509 = vmatprep.mubr.f32.mxu0 0.0
        %510 = vmatmul.mubr.f32.gmra.mrb[0].mxu0 %v405
        %v511 = vpop.f32.mrb[0].mxu0
        %v512 = vadd.f32 0.0, %v511
        %v513 = vpop.f32.mrb[0].mxu0
        %v514 = vadd.f32 0.0, %v513
        %515 = vdwg.mxu0
        %516 = vmatprep.subr.mxu0 %v373
        %517 = vmatpush1.msra.mxu0 %v372
        %518 = vmatprep.subr.mxu0 %v375
        %519 = vmatpush1.msra.mxu0 %v374
        %520 = vmatprep.subr.mxu0 %v377
        %521 = vmatpush1.msra.mxu0 %v376
        %522 = vmatprep.subr.mxu0 %v379
        %523 = vmatpush1.msra.mxu0 %v378
        %524 = vmatprep.subr.mxu0 %v381
        %525 = vmatpush1.msra.mxu0 %v380
        %526 = vmatprep.subr.mxu0 %v383
        %527 = vmatpush1.msra.mxu0 %v382
        %528 = vmatprep.subr.mxu0 %v385
        %529 = vmatpush1.msra.mxu0 %v384
        %530 = vmatprep.subr.mxu0 %v387
        %531 = vmatpush1.msra.mxu0 %v386
        %532 = vmatprep.subr.mxu0 %v389
        %533 = vmatpush1.msra.mxu0 %v388
        %534 = vmatprep.subr.mxu0 %v391
        %535 = vmatpush1.msra.mxu0 %v390
        %536 = vmatprep.subr.mxu0 %v393
        %537 = vmatpush1.msra.mxu0 %v392
        %538 = vmatprep.subr.mxu0 %v395
        %539 = vmatpush1.msra.mxu0 %v394
        %540 = vmatprep.subr.mxu0 %v397
        %541 = vmatpush1.msra.mxu0 %v396
        %542 = vmatprep.subr.mxu0 %v399
        %543 = vmatpush1.msra.mxu0 %v398
        %544 = vmatprep.subr.mxu0 %v401
        %545 = vmatpush1.msra.mxu0 %v400
        %546 = vmatprep.subr.mxu0 %v403
        %547 = vmatpush1.msra.mxu0 %v402
        %548 = vmatprep.subr.mxu0 0.0
        %549 = vmatpush1.msra.mxu0 0.0
        %550 = vmatprep.subr.mxu0 0.0
        %551 = vmatpush1.msra.mxu0 0.0
        %552 = vmatprep.subr.mxu0 0.0
        %553 = vmatpush1.msra.mxu0 0.0
        %554 = vmatprep.subr.mxu0 0.0
        %555 = vmatpush1.msra.mxu0 0.0
        %556 = vmatprep.subr.mxu0 0.0
        %557 = vmatpush1.msra.mxu0 0.0
        %558 = vmatprep.subr.mxu0 0.0
        %559 = vmatpush1.msra.mxu0 0.0
        %560 = vmatprep.subr.mxu0 0.0
        %561 = vmatpush1.msra.mxu0 0.0
        %562 = vmatprep.subr.mxu0 0.0
        %563 = vmatpush1.msra.mxu0 0.0
        %564 = vmatprep.subr.mxu0 0.0
        %565 = vmatpush1.msra.mxu0 0.0
        %566 = vmatprep.subr.mxu0 0.0
        %567 = vmatpush1.msra.mxu0 0.0
        %568 = vmatprep.subr.mxu0 0.0
        %569 = vmatpush1.msra.mxu0 0.0
        %570 = vmatprep.subr.mxu0 0.0
        %571 = vmatpush1.msra.mxu0 0.0
        %572 = vmatprep.subr.mxu0 0.0
        %573 = vmatpush1.msra.mxu0 0.0
        %574 = vmatprep.subr.mxu0 0.0
        %575 = vmatpush1.msra.mxu0 0.0
        %576 = vmatprep.subr.mxu0 0.0
        %577 = vmatpush1.msra.mxu0 0.0
        %578 = vmatprep.subr.mxu0 0.0
        %579 = vmatpush1.msra.mxu0 0.0
        %580 = vmatprep.mubr.f32.mxu0 0.0
        %581 = vmatmul.mubr.f32.gmra.mrb[0].mxu0 %v370
        %v582 = vpop.f32.mrb[0].mxu0
        %v583 = vadd.f32 %v506, %v582
        %v584 = vpop.f32.mrb[0].mxu0
        %v585 = vadd.f32 %v508, %v584
        %586 = vmatprep.mubr.f32.mxu0 0.0
        %587 = vmatmul.mubr.f32.gmra.mrb[0].mxu0 %v371
        %v588 = vpop.f32.mrb[0].mxu0
        %v589 = vadd.f32 %v512, %v588
        %v590 = vpop.f32.mrb[0].mxu0
        %v591 = vadd.f32 %v514, %v590
        %592 = vdwg.mxu0
        %v593 = vld [vmem:[#allocation2 + $0x2] sm:$0xff]
        %v594 = vld [vmem:[#allocation2 + $0xa] sm:$0xff]
        %s595 = scalar_lea.vmem %s1, 512
        %v596 = vld [vmem:[%s595] sm:$0xff]
        %v597 = vld [vmem:[%s595 + $0x8] sm:$0xff]
        %v598 = vld [vmem:[%s595 + $0x10] sm:$0xff]
        %v599 = vld [vmem:[%s595 + $0x18] sm:$0xff]
        %v600 = vld [vmem:[%s595 + $0x20] sm:$0xff]
        %v601 = vld [vmem:[%s595 + $0x28] sm:$0xff]
        %v602 = vld [vmem:[%s595 + $0x30] sm:$0xff]
        %v603 = vld [vmem:[%s595 + $0x38] sm:$0xff]
        %v604 = vld [vmem:[%s595 + $0x40] sm:$0xff]
        %v605 = vld [vmem:[%s595 + $0x48] sm:$0xff]
        %v606 = vld [vmem:[%s595 + $0x50] sm:$0xff]
        %v607 = vld [vmem:[%s595 + $0x58] sm:$0xff]
        %v608 = vld [vmem:[%s595 + $0x60] sm:$0xff]
        %v609 = vld [vmem:[%s595 + $0x68] sm:$0xff]
        %v610 = vld [vmem:[%s595 + $0x70] sm:$0xff]
        %v611 = vld [vmem:[%s595 + $0x78] sm:$0xff]
        %v612 = vld [vmem:[%s595 + $0x80] sm:$0xff]
        %v613 = vld [vmem:[%s595 + $0x88] sm:$0xff]
        %v614 = vld [vmem:[%s595 + $0x90] sm:$0xff]
        %v615 = vld [vmem:[%s595 + $0x98] sm:$0xff]
        %v616 = vld [vmem:[%s595 + $0xa0] sm:$0xff]
        %v617 = vld [vmem:[%s595 + $0xa8] sm:$0xff]
        %v618 = vld [vmem:[%s595 + $0xb0] sm:$0xff]
        %v619 = vld [vmem:[%s595 + $0xb8] sm:$0xff]
        %v620 = vld [vmem:[%s595 + $0xc0] sm:$0xff]
        %v621 = vld [vmem:[%s595 + $0xc8] sm:$0xff]
        %v622 = vld [vmem:[%s595 + $0xd0] sm:$0xff]
        %v623 = vld [vmem:[%s595 + $0xd8] sm:$0xff]
        %v624 = vld [vmem:[%s595 + $0xe0] sm:$0xff]
        %v625 = vld [vmem:[%s595 + $0xe8] sm:$0xff]
        %v626 = vld [vmem:[%s595 + $0xf0] sm:$0xff]
        %v627 = vld [vmem:[%s595 + $0xf8] sm:$0xff]
        %628 = vmatprep.subr.mxu0 %v597
        %629 = vmatpush1.msra.mxu0 %v596
        %630 = vmatprep.subr.mxu0 %v599
        %631 = vmatpush1.msra.mxu0 %v598
        %632 = vmatprep.subr.mxu0 %v601
        %633 = vmatpush1.msra.mxu0 %v600
        %634 = vmatprep.subr.mxu0 %v603
        %635 = vmatpush1.msra.mxu0 %v602
        %636 = vmatprep.subr.mxu0 %v605
        %637 = vmatpush1.msra.mxu0 %v604
        %638 = vmatprep.subr.mxu0 %v607
        %639 = vmatpush1.msra.mxu0 %v606
        %640 = vmatprep.subr.mxu0 %v609
        %641 = vmatpush1.msra.mxu0 %v608
        %642 = vmatprep.subr.mxu0 %v611
        %643 = vmatpush1.msra.mxu0 %v610
        %644 = vmatprep.subr.mxu0 %v613
        %645 = vmatpush1.msra.mxu0 %v612
        %646 = vmatprep.subr.mxu0 %v615
        %647 = vmatpush1.msra.mxu0 %v614
        %648 = vmatprep.subr.mxu0 %v617
        %649 = vmatpush1.msra.mxu0 %v616
        %650 = vmatprep.subr.mxu0 %v619
        %651 = vmatpush1.msra.mxu0 %v618
        %652 = vmatprep.subr.mxu0 %v621
        %653 = vmatpush1.msra.mxu0 %v620
        %654 = vmatprep.subr.mxu0 %v623
        %655 = vmatpush1.msra.mxu0 %v622
        %656 = vmatprep.subr.mxu0 %v625
        %657 = vmatpush1.msra.mxu0 %v624
        %658 = vmatprep.subr.mxu0 %v627
        %659 = vmatpush1.msra.mxu0 %v626
        %660 = vmatprep.subr.mxu0 0.0
        %661 = vmatpush1.msra.mxu0 0.0
        %662 = vmatprep.subr.mxu0 0.0
        %663 = vmatpush1.msra.mxu0 0.0
        %664 = vmatprep.subr.mxu0 0.0
        %665 = vmatpush1.msra.mxu0 0.0
        %666 = vmatprep.subr.mxu0 0.0
        %667 = vmatpush1.msra.mxu0 0.0
        %668 = vmatprep.subr.mxu0 0.0
        %669 = vmatpush1.msra.mxu0 0.0
        %670 = vmatprep.subr.mxu0 0.0
        %671 = vmatpush1.msra.mxu0 0.0
        %672 = vmatprep.subr.mxu0 0.0
        %673 = vmatpush1.msra.mxu0 0.0
        %674 = vmatprep.subr.mxu0 0.0
        %675 = vmatpush1.msra.mxu0 0.0
        %676 = vmatprep.subr.mxu0 0.0
        %677 = vmatpush1.msra.mxu0 0.0
        %678 = vmatprep.subr.mxu0 0.0
        %679 = vmatpush1.msra.mxu0 0.0
        %680 = vmatprep.subr.mxu0 0.0
        %681 = vmatpush1.msra.mxu0 0.0
        %682 = vmatprep.subr.mxu0 0.0
        %683 = vmatpush1.msra.mxu0 0.0
        %684 = vmatprep.subr.mxu0 0.0
        %685 = vmatpush1.msra.mxu0 0.0
        %686 = vmatprep.subr.mxu0 0.0
        %687 = vmatpush1.msra.mxu0 0.0
        %688 = vmatprep.subr.mxu0 0.0
        %689 = vmatpush1.msra.mxu0 0.0
        %690 = vmatprep.subr.mxu0 0.0
        %691 = vmatpush1.msra.mxu0 0.0
        %692 = vmatprep.mubr.f32.mxu0 0.0
        %693 = vmatmul.mubr.f32.gmra.mrb[0].mxu0 %v593
        %v694 = vpop.f32.mrb[0].mxu0
        %v695 = vadd.f32 0.0, %v694
        %v696 = vpop.f32.mrb[0].mxu0
        %v697 = vadd.f32 0.0, %v696
        %698 = vmatprep.mubr.f32.mxu0 0.0
        %699 = vmatmul.mubr.f32.gmra.mrb[0].mxu0 %v594
        %v700 = vpop.f32.mrb[0].mxu0
        %v701 = vadd.f32 0.0, %v700
        %v702 = vpop.f32.mrb[0].mxu0
        %v703 = vadd.f32 0.0, %v702
        %704 = vdwg.mxu0
        %v705 = vadd.f32 %v583, %v695
        %v706 = vadd.f32 %v585, %v697
        %v707 = vadd.f32 %v589, %v701
        %v708 = vadd.f32 %v591, %v703
        %v709 = vld [vmem:[%s2] sm:$0x3]
        %v711 = vlaneseq
        %v712 = vshrl.u32 %v711, 7
        %v713 = vsub.s32 0, %v712
        %v714 = vrot.slane %v709, %v713
        %v715 = vlaneseq
        %v716 = vshrl.u32 %v715, 7
        %v717 = vsub.s32 1, %v716
        %v718 = vrot.slane %v709, %v717
        %v721 = vmul.f32 %v705, %v714
        %v722 = vmul.f32 %v706, %v718
        %v723 = vmul.f32 %v707, %v714
        %v724 = vmul.f32 %v708, %v718
        %v725 = vld [vmem:[%s3] sm:$0x3]
        %v727 = vlaneseq
        %v728 = vshrl.u32 %v727, 7
        %v729 = vsub.s32 0, %v728
        %v730 = vrot.slane %v725, %v729
        %v731 = vlaneseq
        %v732 = vshrl.u32 %v731, 7
        %v733 = vsub.s32 1, %v732
        %v734 = vrot.slane %v725, %v733
        %v737 = vadd.f32 %v721, %v730
        %v738 = vadd.f32 %v722, %v734
        %v739 = vadd.f32 %v723, %v730
        %v740 = vadd.f32 %v724, %v734
        %v741 = vxor.u32 %v737, 2147483648
        %v742 = vxor.u32 %v738, 2147483648
        %v743 = vxor.u32 %v739, 2147483648
        %v744 = vxor.u32 %v740, 2147483648
        %v745 = vmul.f32 %v741, 1.442695
        %v746 = vpow.pop %v745
        %v747 = vmul.f32 %v742, 1.442695
        %v748 = vpow.pop %v747
        %v749 = vmul.f32 %v743, 1.442695
        %v750 = vpow.pop %v749
        %v751 = vmul.f32 %v744, 1.442695
        %v752 = vpow.pop %v751
        %v753 = vadd.f32 %v746, 1.0
        %v754 = vadd.f32 %v748, 1.0
        %v755 = vadd.f32 %v750, 1.0
        %v756 = vadd.f32 %v752, 1.0
        %v757 = vrcp.pop %v753
        %v758 = vmul.f32 1.0, %v757
        %v759 = vrcp.pop %v754
        %v760 = vmul.f32 1.0, %v759
        %v761 = vrcp.pop %v755
        %v762 = vmul.f32 1.0, %v761
        %v763 = vrcp.pop %v756
        %v764 = vmul.f32 1.0, %v763
        %v765 = vmul.f32 %v737, %v758
        %v766 = vmul.f32 %v738, %v760
        %v767 = vmul.f32 %v739, %v762
        %v768 = vmul.f32 %v740, %v764
        %769 = vst [vmem:[#allocation3] sm:$0xff] 0.0
        %770 = vst [vmem:[#allocation3 + $0x8] sm:$0xff] 0.0
        %771 = vst [vmem:[#allocation3 + $0x10] sm:$0xff] 0.0
        %772 = vst [vmem:[#allocation3 + $0x18] sm:$0xff] 0.0
        %773 = vst [vmem:[#allocation3 + $0x20] sm:$0x3] 0.0
        %774 = vst [vmem:[#allocation3 + $0x28] sm:$0x3] 0.0
        %vm779 = vcmask 1040384
        %v780 = vrot.slane %v765, 7
        %v781 = vrot.slane %v766, 7
        %v782 = vrot.slane %v767, 7
        %v783 = vsel %vm779, %v780, %v782
        %v784 = vrot.slane %v768, 7
        %v785 = vsel %vm779, %v781, %v784
        %792 = vst [vmem:[#allocation3] sm:$0xfe] %v780
        %793 = vst [vmem:[#allocation3 + $0x8] sm:$0xfe] %v781
        %794 = vst [vmem:[#allocation3 + $0x10] sm:$0xff] %v783
        %795 = vst [vmem:[#allocation3 + $0x18] sm:$0xff] %v785
        %796 = vst [vmem:[#allocation3 + $0x20] sm:$0x1] %v782
        %797 = vst [vmem:[#allocation3 + $0x28] sm:$0x1] %v784
        %v798 = vld [vmem:[#allocation3] sm:$0xff]
        %v799 = vld [vmem:[#allocation3 + $0x8] sm:$0xff]
        %v800 = vld [vmem:[#allocation3 + $0x10] sm:$0xff]
        %v801 = vld [vmem:[#allocation3 + $0x18] sm:$0xff]
        %v802 = vld [vmem:[#allocation4] sm:$0xff]
        %v803 = vld [vmem:[#allocation4 + $0x8] sm:$0xff]
        %v804 = vld [vmem:[#allocation4 + $0x10] sm:$0xff]
        %v805 = vld [vmem:[#allocation4 + $0x18] sm:$0xff]
        %v806 = vld [vmem:[#allocation4 + $0x20] sm:$0xff]
        %v807 = vld [vmem:[#allocation4 + $0x28] sm:$0xff]
        %v808 = vld [vmem:[#allocation4 + $0x30] sm:$0xff]
        %v809 = vld [vmem:[#allocation4 + $0x38] sm:$0xff]
        %v810 = vld [vmem:[#allocation4 + $0x40] sm:$0xff]
        %v811 = vld [vmem:[#allocation4 + $0x48] sm:$0xff]
        %v812 = vld [vmem:[#allocation4 + $0x50] sm:$0xff]
        %v813 = vld [vmem:[#allocation4 + $0x58] sm:$0xff]
        %v814 = vld [vmem:[#allocation4 + $0x60] sm:$0xff]
        %v815 = vld [vmem:[#allocation4 + $0x68] sm:$0xff]
        %v816 = vld [vmem:[#allocation4 + $0x70] sm:$0xff]
        %v817 = vld [vmem:[#allocation4 + $0x78] sm:$0xff]
        %v818 = vld [vmem:[#allocation4 + $0x80] sm:$0xff]
        %v819 = vld [vmem:[#allocation4 + $0x88] sm:$0xff]
        %v820 = vld [vmem:[#allocation4 + $0x90] sm:$0xff]
        %v821 = vld [vmem:[#allocation4 + $0x98] sm:$0xff]
        %v822 = vld [vmem:[#allocation4 + $0xa0] sm:$0xff]
        %v823 = vld [vmem:[#allocation4 + $0xa8] sm:$0xff]
        %v824 = vld [vmem:[#allocation4 + $0xb0] sm:$0xff]
        %v825 = vld [vmem:[#allocation4 + $0xb8] sm:$0xff]
        %v826 = vld [vmem:[#allocation4 + $0xc0] sm:$0xff]
        %v827 = vld [vmem:[#allocation4 + $0xc8] sm:$0xff]
        %v828 = vld [vmem:[#allocation4 + $0xd0] sm:$0xff]
        %v829 = vld [vmem:[#allocation4 + $0xd8] sm:$0xff]
        %v830 = vld [vmem:[#allocation4 + $0xe0] sm:$0xff]
        %v831 = vld [vmem:[#allocation4 + $0xe8] sm:$0xff]
        %v832 = vld [vmem:[#allocation4 + $0xf0] sm:$0xff]
        %v833 = vld [vmem:[#allocation4 + $0xf8] sm:$0xff]
        %v834 = vld [vmem:[#allocation4 + $0x100] sm:$0xff]
        %v835 = vld [vmem:[#allocation4 + $0x108] sm:$0xff]
        %v836 = vld [vmem:[#allocation4 + $0x110] sm:$0xff]
        %v837 = vld [vmem:[#allocation4 + $0x118] sm:$0xff]
        %v838 = vld [vmem:[#allocation4 + $0x120] sm:$0xff]
        %v839 = vld [vmem:[#allocation4 + $0x128] sm:$0xff]
        %v840 = vld [vmem:[#allocation4 + $0x130] sm:$0xff]
        %v841 = vld [vmem:[#allocation4 + $0x138] sm:$0xff]
        %v842 = vld [vmem:[#allocation4 + $0x140] sm:$0xff]
        %v843 = vld [vmem:[#allocation4 + $0x148] sm:$0xff]
        %v844 = vld [vmem:[#allocation4 + $0x150] sm:$0xff]
        %v845 = vld [vmem:[#allocation4 + $0x158] sm:$0xff]
        %v846 = vld [vmem:[#allocation4 + $0x160] sm:$0xff]
        %v847 = vld [vmem:[#allocation4 + $0x168] sm:$0xff]
        %v848 = vld [vmem:[#allocation4 + $0x170] sm:$0xff]
        %v849 = vld [vmem:[#allocation4 + $0x178] sm:$0xff]
        %v850 = vld [vmem:[#allocation4 + $0x180] sm:$0xff]
        %v851 = vld [vmem:[#allocation4 + $0x188] sm:$0xff]
        %v852 = vld [vmem:[#allocation4 + $0x190] sm:$0xff]
        %v853 = vld [vmem:[#allocation4 + $0x198] sm:$0xff]
        %v854 = vld [vmem:[#allocation4 + $0x1a0] sm:$0xff]
        %v855 = vld [vmem:[#allocation4 + $0x1a8] sm:$0xff]
        %v856 = vld [vmem:[#allocation4 + $0x1b0] sm:$0xff]
        %v857 = vld [vmem:[#allocation4 + $0x1b8] sm:$0xff]
        %v858 = vld [vmem:[#allocation4 + $0x1c0] sm:$0xff]
        %v859 = vld [vmem:[#allocation4 + $0x1c8] sm:$0xff]
        %v860 = vld [vmem:[#allocation4 + $0x1d0] sm:$0xff]
        %v861 = vld [vmem:[#allocation4 + $0x1d8] sm:$0xff]
        %v862 = vld [vmem:[#allocation4 + $0x1e0] sm:$0xff]
        %v863 = vld [vmem:[#allocation4 + $0x1e8] sm:$0xff]
        %v864 = vld [vmem:[#allocation4 + $0x1f0] sm:$0xff]
        %v865 = vld [vmem:[#allocation4 + $0x1f8] sm:$0xff]
        %v866 = vld [vmem:[#allocation3] sm:$0xfe]
        %v867 = vld [vmem:[#allocation3 + $0x8] sm:$0xfe]
        %v868 = vld [vmem:[#allocation3 + $0x20] sm:$0x1]
        %v869 = vld [vmem:[#allocation3 + $0x28] sm:$0x1]
        %s870 = scalar_lea.vmem [#allocation4], 512
        %v871 = vld [vmem:[%s870] sm:$0xff]
        %v872 = vld [vmem:[%s870 + $0x8] sm:$0xff]
        %v873 = vld [vmem:[%s870 + $0x10] sm:$0xff]
        %v874 = vld [vmem:[%s870 + $0x18] sm:$0xff]
        %v875 = vld [vmem:[%s870 + $0x20] sm:$0xff]
        %v876 = vld [vmem:[%s870 + $0x28] sm:$0xff]
        %v877 = vld [vmem:[%s870 + $0x30] sm:$0xff]
        %v878 = vld [vmem:[%s870 + $0x38] sm:$0xff]
        %v879 = vld [vmem:[%s870 + $0x40] sm:$0xff]
        %v880 = vld [vmem:[%s870 + $0x48] sm:$0xff]
        %v881 = vld [vmem:[%s870 + $0x50] sm:$0xff]
        %v882 = vld [vmem:[%s870 + $0x58] sm:$0xff]
        %v883 = vld [vmem:[%s870 + $0x60] sm:$0xff]
        %v884 = vld [vmem:[%s870 + $0x68] sm:$0xff]
        %v885 = vld [vmem:[%s870 + $0x70] sm:$0xff]
        %v886 = vld [vmem:[%s870 + $0x78] sm:$0xff]
        %v887 = vld [vmem:[%s870 + $0x80] sm:$0xff]
        %v888 = vld [vmem:[%s870 + $0x88] sm:$0xff]
        %v889 = vld [vmem:[%s870 + $0x90] sm:$0xff]
        %v890 = vld [vmem:[%s870 + $0x98] sm:$0xff]
        %v891 = vld [vmem:[%s870 + $0xa0] sm:$0xff]
        %v892 = vld [vmem:[%s870 + $0xa8] sm:$0xff]
        %v893 = vld [vmem:[%s870 + $0xb0] sm:$0xff]
        %v894 = vld [vmem:[%s870 + $0xb8] sm:$0xff]
        %v895 = vld [vmem:[%s870 + $0xc0] sm:$0xff]
        %v896 = vld [vmem:[%s870 + $0xc8] sm:$0xff]
        %v897 = vld [vmem:[%s870 + $0xd0] sm:$0xff]
        %v898 = vld [vmem:[%s870 + $0xd8] sm:$0xff]
        %v899 = vld [vmem:[%s870 + $0xe0] sm:$0xff]
        %v900 = vld [vmem:[%s870 + $0xe8] sm:$0xff]
        %v901 = vld [vmem:[%s870 + $0xf0] sm:$0xff]
        %v902 = vld [vmem:[%s870 + $0xf8] sm:$0xff]
        %v903 = vld [vmem:[%s870 + $0x100] sm:$0xff]
        %v904 = vld [vmem:[%s870 + $0x108] sm:$0xff]
        %v905 = vld [vmem:[%s870 + $0x110] sm:$0xff]
        %v906 = vld [vmem:[%s870 + $0x118] sm:$0xff]
        %v907 = vld [vmem:[%s870 + $0x120] sm:$0xff]
        %v908 = vld [vmem:[%s870 + $0x128] sm:$0xff]
        %v909 = vld [vmem:[%s870 + $0x130] sm:$0xff]
        %v910 = vld [vmem:[%s870 + $0x138] sm:$0xff]
        %v911 = vld [vmem:[%s870 + $0x140] sm:$0xff]
        %v912 = vld [vmem:[%s870 + $0x148] sm:$0xff]
        %v913 = vld [vmem:[%s870 + $0x150] sm:$0xff]
        %v914 = vld [vmem:[%s870 + $0x158] sm:$0xff]
        %v915 = vld [vmem:[%s870 + $0x160] sm:$0xff]
        %v916 = vld [vmem:[%s870 + $0x168] sm:$0xff]
        %v917 = vld [vmem:[%s870 + $0x170] sm:$0xff]
        %v918 = vld [vmem:[%s870 + $0x178] sm:$0xff]
        %v919 = vld [vmem:[%s870 + $0x180] sm:$0xff]
        %v920 = vld [vmem:[%s870 + $0x188] sm:$0xff]
        %v921 = vld [vmem:[%s870 + $0x190] sm:$0xff]
        %v922 = vld [vmem:[%s870 + $0x198] sm:$0xff]
        %v923 = vld [vmem:[%s870 + $0x1a0] sm:$0xff]
        %v924 = vld [vmem:[%s870 + $0x1a8] sm:$0xff]
        %v925 = vld [vmem:[%s870 + $0x1b0] sm:$0xff]
        %v926 = vld [vmem:[%s870 + $0x1b8] sm:$0xff]
        %v927 = vld [vmem:[%s870 + $0x1c0] sm:$0xff]
        %v928 = vld [vmem:[%s870 + $0x1c8] sm:$0xff]
        %v929 = vld [vmem:[%s870 + $0x1d0] sm:$0xff]
        %v930 = vld [vmem:[%s870 + $0x1d8] sm:$0xff]
        %v931 = vld [vmem:[%s870 + $0x1e0] sm:$0xff]
        %v932 = vld [vmem:[%s870 + $0x1e8] sm:$0xff]
        %v933 = vld [vmem:[%s870 + $0x1f0] sm:$0xff]
        %v934 = vld [vmem:[%s870 + $0x1f8] sm:$0xff]
        %vm941 = vcmask 1046528
        %v942 = vrot.slane %v866, 1
        %v943 = vrot.slane %v800, 1
        %v944 = vsel %vm941, %v942, %v943
        %v945 = vrot.slane %v867, 1
        %v946 = vrot.slane %v801, 1
        %v947 = vsel %vm941, %v945, %v946
        %v948 = vrot.slane %v868, 1
        %v949 = vsel %vm941, %v943, %v948
        %v950 = vrot.slane %v869, 1
        %v951 = vsel %vm941, %v946, %v950
        %956 = vmatprep.subr.mxu0 %v872
        %957 = vmatpush1.msra.mxu0 %v871
        %958 = vmatprep.subr.mxu0 %v874
        %959 = vmatpush1.msra.mxu0 %v873
        %960 = vmatprep.subr.mxu0 %v876
        %961 = vmatpush1.msra.mxu0 %v875
        %962 = vmatprep.subr.mxu0 %v878
        %963 = vmatpush1.msra.mxu0 %v877
        %964 = vmatprep.subr.mxu0 %v880
        %965 = vmatpush1.msra.mxu0 %v879
        %966 = vmatprep.subr.mxu0 %v882
        %967 = vmatpush1.msra.mxu0 %v881
        %968 = vmatprep.subr.mxu0 %v884
        %969 = vmatpush1.msra.mxu0 %v883
        %970 = vmatprep.subr.mxu0 %v886
        %971 = vmatpush1.msra.mxu0 %v885
        %972 = vmatprep.subr.mxu0 %v888
        %973 = vmatpush1.msra.mxu0 %v887
        %974 = vmatprep.subr.mxu0 %v890
        %975 = vmatpush1.msra.mxu0 %v889
        %976 = vmatprep.subr.mxu0 %v892
        %977 = vmatpush1.msra.mxu0 %v891
        %978 = vmatprep.subr.mxu0 %v894
        %979 = vmatpush1.msra.mxu0 %v893
        %980 = vmatprep.subr.mxu0 %v896
        %981 = vmatpush1.msra.mxu0 %v895
        %982 = vmatprep.subr.mxu0 %v898
        %983 = vmatpush1.msra.mxu0 %v897
        %984 = vmatprep.subr.mxu0 %v900
        %985 = vmatpush1.msra.mxu0 %v899
        %986 = vmatprep.subr.mxu0 %v902
        %987 = vmatpush1.msra.mxu0 %v901
        %988 = vmatprep.subr.mxu0 %v904
        %989 = vmatpush1.msra.mxu0 %v903
        %990 = vmatprep.subr.mxu0 %v906
        %991 = vmatpush1.msra.mxu0 %v905
        %992 = vmatprep.subr.mxu0 %v908
        %993 = vmatpush1.msra.mxu0 %v907
        %994 = vmatprep.subr.mxu0 %v910
        %995 = vmatpush1.msra.mxu0 %v909
        %996 = vmatprep.subr.mxu0 %v912
        %997 = vmatpush1.msra.mxu0 %v911
        %998 = vmatprep.subr.mxu0 %v914
        %999 = vmatpush1.msra.mxu0 %v913
        %1000 = vmatprep.subr.mxu0 %v916
        %1001 = vmatpush1.msra.mxu0 %v915
        %1002 = vmatprep.subr.mxu0 %v918
        %1003 = vmatpush1.msra.mxu0 %v917
        %1004 = vmatprep.subr.mxu0 %v920
        %1005 = vmatpush1.msra.mxu0 %v919
        %1006 = vmatprep.subr.mxu0 %v922
        %1007 = vmatpush1.msra.mxu0 %v921
        %1008 = vmatprep.subr.mxu0 %v924
        %1009 = vmatpush1.msra.mxu0 %v923
        %1010 = vmatprep.subr.mxu0 %v926
        %1011 = vmatpush1.msra.mxu0 %v925
        %1012 = vmatprep.subr.mxu0 %v928
        %1013 = vmatpush1.msra.mxu0 %v927
        %1014 = vmatprep.subr.mxu0 %v930
        %1015 = vmatpush1.msra.mxu0 %v929
        %1016 = vmatprep.subr.mxu0 %v932
        %1017 = vmatpush1.msra.mxu0 %v931
        %1018 = vmatprep.subr.mxu0 %v934
        %1019 = vmatpush1.msra.mxu0 %v933
        %1020 = vmatprep.mubr.f32.mxu0 %v947
        %1021 = vmatmul.mubr.f32.gmra.mrb[0].mxu0 %v944
        %v1022 = vpop.f32.mrb[0].mxu0
        %v1023 = vadd.f32 0.0, %v1022
        %v1024 = vpop.f32.mrb[0].mxu0
        %v1025 = vadd.f32 0.0, %v1024
        %1026 = vmatprep.mubr.f32.mxu0 %v951
        %1027 = vmatmul.mubr.f32.gmra.mrb[0].mxu0 %v949
        %v1028 = vpop.f32.mrb[0].mxu0
        %v1029 = vadd.f32 0.0, %v1028
        %v1030 = vpop.f32.mrb[0].mxu0
        %v1031 = vadd.f32 0.0, %v1030
        %1032 = vdwg.mxu0
        %1033 = vmatprep.subr.mxu0 %v803
        %1034 = vmatpush1.msra.mxu0 %v802
        %1035 = vmatprep.subr.mxu0 %v805
        %1036 = vmatpush1.msra.mxu0 %v804
        %1037 = vmatprep.subr.mxu0 %v807
        %1038 = vmatpush1.msra.mxu0 %v806
        %1039 = vmatprep.subr.mxu0 %v809
        %1040 = vmatpush1.msra.mxu0 %v808
        %1041 = vmatprep.subr.mxu0 %v811
        %1042 = vmatpush1.msra.mxu0 %v810
        %1043 = vmatprep.subr.mxu0 %v813
        %1044 = vmatpush1.msra.mxu0 %v812
        %1045 = vmatprep.subr.mxu0 %v815
        %1046 = vmatpush1.msra.mxu0 %v814
        %1047 = vmatprep.subr.mxu0 %v817
        %1048 = vmatpush1.msra.mxu0 %v816
        %1049 = vmatprep.subr.mxu0 %v819
        %1050 = vmatpush1.msra.mxu0 %v818
        %1051 = vmatprep.subr.mxu0 %v821
        %1052 = vmatpush1.msra.mxu0 %v820
        %1053 = vmatprep.subr.mxu0 %v823
        %1054 = vmatpush1.msra.mxu0 %v822
        %1055 = vmatprep.subr.mxu0 %v825
        %1056 = vmatpush1.msra.mxu0 %v824
        %1057 = vmatprep.subr.mxu0 %v827
        %1058 = vmatpush1.msra.mxu0 %v826
        %1059 = vmatprep.subr.mxu0 %v829
        %1060 = vmatpush1.msra.mxu0 %v828
        %1061 = vmatprep.subr.mxu0 %v831
        %1062 = vmatpush1.msra.mxu0 %v830
        %1063 = vmatprep.subr.mxu0 %v833
        %1064 = vmatpush1.msra.mxu0 %v832
        %1065 = vmatprep.subr.mxu0 %v835
        %1066 = vmatpush1.msra.mxu0 %v834
        %1067 = vmatprep.subr.mxu0 %v837
        %1068 = vmatpush1.msra.mxu0 %v836
        %1069 = vmatprep.subr.mxu0 %v839
        %1070 = vmatpush1.msra.mxu0 %v838
        %1071 = vmatprep.subr.mxu0 %v841
        %1072 = vmatpush1.msra.mxu0 %v840
        %1073 = vmatprep.subr.mxu0 %v843
        %1074 = vmatpush1.msra.mxu0 %v842
        %1075 = vmatprep.subr.mxu0 %v845
        %1076 = vmatpush1.msra.mxu0 %v844
        %1077 = vmatprep.subr.mxu0 %v847
        %1078 = vmatpush1.msra.mxu0 %v846
        %1079 = vmatprep.subr.mxu0 %v849
        %1080 = vmatpush1.msra.mxu0 %v848
        %1081 = vmatprep.subr.mxu0 %v851
        %1082 = vmatpush1.msra.mxu0 %v850
        %1083 = vmatprep.subr.mxu0 %v853
        %1084 = vmatpush1.msra.mxu0 %v852
        %1085 = vmatprep.subr.mxu0 %v855
        %1086 = vmatpush1.msra.mxu0 %v854
        %1087 = vmatprep.subr.mxu0 %v857
        %1088 = vmatpush1.msra.mxu0 %v856
        %1089 = vmatprep.subr.mxu0 %v859
        %1090 = vmatpush1.msra.mxu0 %v858
        %1091 = vmatprep.subr.mxu0 %v861
        %1092 = vmatpush1.msra.mxu0 %v860
        %1093 = vmatprep.subr.mxu0 %v863
        %1094 = vmatpush1.msra.mxu0 %v862
        %1095 = vmatprep.subr.mxu0 %v865
        %1096 = vmatpush1.msra.mxu0 %v864
        %1097 = vmatprep.mubr.f32.mxu0 %v799
        %1098 = vmatmul.mubr.f32.gmra.mrb[0].mxu0 %v798
        %v1099 = vpop.f32.mrb[0].mxu0
        %v1100 = vadd.f32 %v1023, %v1099
        %v1101 = vpop.f32.mrb[0].mxu0
        %v1102 = vadd.f32 %v1025, %v1101
        %1103 = vmatprep.mubr.f32.mxu0 %v801
        %1104 = vmatmul.mubr.f32.gmra.mrb[0].mxu0 %v800
        %v1105 = vpop.f32.mrb[0].mxu0
        %v1106 = vadd.f32 %v1029, %v1105
        %v1107 = vpop.f32.mrb[0].mxu0
        %v1108 = vadd.f32 %v1031, %v1107
        %1109 = vdwg.mxu0
        %v1110 = vld [vmem:[#allocation3] sm:$0xfc]
        %v1111 = vld [vmem:[#allocation3 + $0x8] sm:$0xfc]
        %v1112 = vld [vmem:[#allocation3 + $0x20] sm:$0x3]
        %v1113 = vld [vmem:[#allocation3 + $0x28] sm:$0x3]
        %s1114 = scalar_lea.vmem [#allocation4], 1024
        %v1115 = vld [vmem:[%s1114] sm:$0xff]
        %v1116 = vld [vmem:[%s1114 + $0x8] sm:$0xff]
        %v1117 = vld [vmem:[%s1114 + $0x10] sm:$0xff]
        %v1118 = vld [vmem:[%s1114 + $0x18] sm:$0xff]
        %v1119 = vld [vmem:[%s1114 + $0x20] sm:$0xff]
        %v1120 = vld [vmem:[%s1114 + $0x28] sm:$0xff]
        %v1121 = vld [vmem:[%s1114 + $0x30] sm:$0xff]
        %v1122 = vld [vmem:[%s1114 + $0x38] sm:$0xff]
        %v1123 = vld [vmem:[%s1114 + $0x40] sm:$0xff]
        %v1124 = vld [vmem:[%s1114 + $0x48] sm:$0xff]
        %v1125 = vld [vmem:[%s1114 + $0x50] sm:$0xff]
        %v1126 = vld [vmem:[%s1114 + $0x58] sm:$0xff]
        %v1127 = vld [vmem:[%s1114 + $0x60] sm:$0xff]
        %v1128 = vld [vmem:[%s1114 + $0x68] sm:$0xff]
        %v1129 = vld [vmem:[%s1114 + $0x70] sm:$0xff]
        %v1130 = vld [vmem:[%s1114 + $0x78] sm:$0xff]
        %v1131 = vld [vmem:[%s1114 + $0x80] sm:$0xff]
        %v1132 = vld [vmem:[%s1114 + $0x88] sm:$0xff]
        %v1133 = vld [vmem:[%s1114 + $0x90] sm:$0xff]
        %v1134 = vld [vmem:[%s1114 + $0x98] sm:$0xff]
        %v1135 = vld [vmem:[%s1114 + $0xa0] sm:$0xff]
        %v1136 = vld [vmem:[%s1114 + $0xa8] sm:$0xff]
        %v1137 = vld [vmem:[%s1114 + $0xb0] sm:$0xff]
        %v1138 = vld [vmem:[%s1114 + $0xb8] sm:$0xff]
        %v1139 = vld [vmem:[%s1114 + $0xc0] sm:$0xff]
        %v1140 = vld [vmem:[%s1114 + $0xc8] sm:$0xff]
        %v1141 = vld [vmem:[%s1114 + $0xd0] sm:$0xff]
        %v1142 = vld [vmem:[%s1114 + $0xd8] sm:$0xff]
        %v1143 = vld [vmem:[%s1114 + $0xe0] sm:$0xff]
        %v1144 = vld [vmem:[%s1114 + $0xe8] sm:$0xff]
        %v1145 = vld [vmem:[%s1114 + $0xf0] sm:$0xff]
        %v1146 = vld [vmem:[%s1114 + $0xf8] sm:$0xff]
        %v1147 = vld [vmem:[%s1114 + $0x100] sm:$0xff]
        %v1148 = vld [vmem:[%s1114 + $0x108] sm:$0xff]
        %v1149 = vld [vmem:[%s1114 + $0x110] sm:$0xff]
        %v1150 = vld [vmem:[%s1114 + $0x118] sm:$0xff]
        %v1151 = vld [vmem:[%s1114 + $0x120] sm:$0xff]
        %v1152 = vld [vmem:[%s1114 + $0x128] sm:$0xff]
        %v1153 = vld [vmem:[%s1114 + $0x130] sm:$0xff]
        %v1154 = vld [vmem:[%s1114 + $0x138] sm:$0xff]
        %v1155 = vld [vmem:[%s1114 + $0x140] sm:$0xff]
        %v1156 = vld [vmem:[%s1114 + $0x148] sm:$0xff]
        %v1157 = vld [vmem:[%s1114 + $0x150] sm:$0xff]
        %v1158 = vld [vmem:[%s1114 + $0x158] sm:$0xff]
        %v1159 = vld [vmem:[%s1114 + $0x160] sm:$0xff]
        %v1160 = vld [vmem:[%s1114 + $0x168] sm:$0xff]
        %v1161 = vld [vmem:[%s1114 + $0x170] sm:$0xff]
        %v1162 = vld [vmem:[%s1114 + $0x178] sm:$0xff]
        %v1163 = vld [vmem:[%s1114 + $0x180] sm:$0xff]
        %v1164 = vld [vmem:[%s1114 + $0x188] sm:$0xff]
        %v1165 = vld [vmem:[%s1114 + $0x190] sm:$0xff]
        %v1166 = vld [vmem:[%s1114 + $0x198] sm:$0xff]
        %v1167 = vld [vmem:[%s1114 + $0x1a0] sm:$0xff]
        %v1168 = vld [vmem:[%s1114 + $0x1a8] sm:$0xff]
        %v1169 = vld [vmem:[%s1114 + $0x1b0] sm:$0xff]
        %v1170 = vld [vmem:[%s1114 + $0x1b8] sm:$0xff]
        %v1171 = vld [vmem:[%s1114 + $0x1c0] sm:$0xff]
        %v1172 = vld [vmem:[%s1114 + $0x1c8] sm:$0xff]
        %v1173 = vld [vmem:[%s1114 + $0x1d0] sm:$0xff]
        %v1174 = vld [vmem:[%s1114 + $0x1d8] sm:$0xff]
        %v1175 = vld [vmem:[%s1114 + $0x1e0] sm:$0xff]
        %v1176 = vld [vmem:[%s1114 + $0x1e8] sm:$0xff]
        %v1177 = vld [vmem:[%s1114 + $0x1f0] sm:$0xff]
        %v1178 = vld [vmem:[%s1114 + $0x1f8] sm:$0xff]
        %vm1183 = vcmask 1045504
        %v1184 = vrot.slane %v1110, 2
        %v1185 = vrot.slane %v800, 2
        %v1186 = vsel %vm1183, %v1184, %v1185
        %v1187 = vrot.slane %v1111, 2
        %v1188 = vrot.slane %v801, 2
        %v1189 = vsel %vm1183, %v1187, %v1188
        %v1190 = vrot.slane %v1112, 2
        %v1191 = vsel %vm1183, %v1185, %v1190
        %v1192 = vrot.slane %v1113, 2
        %v1193 = vsel %vm1183, %v1188, %v1192
        %1198 = vmatprep.subr.mxu0 %v1116
        %1199 = vmatpush1.msra.mxu0 %v1115
        %1200 = vmatprep.subr.mxu0 %v1118
        %1201 = vmatpush1.msra.mxu0 %v1117
        %1202 = vmatprep.subr.mxu0 %v1120
        %1203 = vmatpush1.msra.mxu0 %v1119
        %1204 = vmatprep.subr.mxu0 %v1122
        %1205 = vmatpush1.msra.mxu0 %v1121
        %1206 = vmatprep.subr.mxu0 %v1124
        %1207 = vmatpush1.msra.mxu0 %v1123
        %1208 = vmatprep.subr.mxu0 %v1126
        %1209 = vmatpush1.msra.mxu0 %v1125
        %1210 = vmatprep.subr.mxu0 %v1128
        %1211 = vmatpush1.msra.mxu0 %v1127
        %1212 = vmatprep.subr.mxu0 %v1130
        %1213 = vmatpush1.msra.mxu0 %v1129
        %1214 = vmatprep.subr.mxu0 %v1132
        %1215 = vmatpush1.msra.mxu0 %v1131
        %1216 = vmatprep.subr.mxu0 %v1134
        %1217 = vmatpush1.msra.mxu0 %v1133
        %1218 = vmatprep.subr.mxu0 %v1136
        %1219 = vmatpush1.msra.mxu0 %v1135
        %1220 = vmatprep.subr.mxu0 %v1138
        %1221 = vmatpush1.msra.mxu0 %v1137
        %1222 = vmatprep.subr.mxu0 %v1140
        %1223 = vmatpush1.msra.mxu0 %v1139
        %1224 = vmatprep.subr.mxu0 %v1142
        %1225 = vmatpush1.msra.mxu0 %v1141
        %1226 = vmatprep.subr.mxu0 %v1144
        %1227 = vmatpush1.msra.mxu0 %v1143
        %1228 = vmatprep.subr.mxu0 %v1146
        %1229 = vmatpush1.msra.mxu0 %v1145
        %1230 = vmatprep.subr.mxu0 %v1148
        %1231 = vmatpush1.msra.mxu0 %v1147
        %1232 = vmatprep.subr.mxu0 %v1150
        %1233 = vmatpush1.msra.mxu0 %v1149
        %1234 = vmatprep.subr.mxu0 %v1152
        %1235 = vmatpush1.msra.mxu0 %v1151
        %1236 = vmatprep.subr.mxu0 %v1154
        %1237 = vmatpush1.msra.mxu0 %v1153
        %1238 = vmatprep.subr.mxu0 %v1156
        %1239 = vmatpush1.msra.mxu0 %v1155
        %1240 = vmatprep.subr.mxu0 %v1158
        %1241 = vmatpush1.msra.mxu0 %v1157
        %1242 = vmatprep.subr.mxu0 %v1160
        %1243 = vmatpush1.msra.mxu0 %v1159
        %1244 = vmatprep.subr.mxu0 %v1162
        %1245 = vmatpush1.msra.mxu0 %v1161
        %1246 = vmatprep.subr.mxu0 %v1164
        %1247 = vmatpush1.msra.mxu0 %v1163
        %1248 = vmatprep.subr.mxu0 %v1166
        %1249 = vmatpush1.msra.mxu0 %v1165
        %1250 = vmatprep.subr.mxu0 %v1168
        %1251 = vmatpush1.msra.mxu0 %v1167
        %1252 = vmatprep.subr.mxu0 %v1170
        %1253 = vmatpush1.msra.mxu0 %v1169
        %1254 = vmatprep.subr.mxu0 %v1172
        %1255 = vmatpush1.msra.mxu0 %v1171
        %1256 = vmatprep.subr.mxu0 %v1174
        %1257 = vmatpush1.msra.mxu0 %v1173
        %1258 = vmatprep.subr.mxu0 %v1176
        %1259 = vmatpush1.msra.mxu0 %v1175
        %1260 = vmatprep.subr.mxu0 %v1178
        %1261 = vmatpush1.msra.mxu0 %v1177
        %1262 = vmatprep.mubr.f32.mxu0 %v1189
        %1263 = vmatmul.mubr.f32.gmra.mrb[0].mxu0 %v1186
        %v1264 = vpop.f32.mrb[0].mxu0
        %v1265 = vadd.f32 0.0, %v1264
        %v1266 = vpop.f32.mrb[0].mxu0
        %v1267 = vadd.f32 0.0, %v1266
        %1268 = vmatprep.mubr.f32.mxu0 %v1193
        %1269 = vmatmul.mubr.f32.gmra.mrb[0].mxu0 %v1191
        %v1270 = vpop.f32.mrb[0].mxu0
        %v1271 = vadd.f32 0.0, %v1270
        %v1272 = vpop.f32.mrb[0].mxu0
        %v1273 = vadd.f32 0.0, %v1272
        %1274 = vdwg.mxu0
        %v1275 = vadd.f32 %v1100, %v1265
        %v1276 = vadd.f32 %v1102, %v1267
        %v1277 = vadd.f32 %v1106, %v1271
        %v1278 = vadd.f32 %v1108, %v1273
        %v1279 = vld [vmem:[%s5] sm:$0x3]
        %v1281 = vlaneseq
        %v1282 = vshrl.u32 %v1281, 7
        %v1283 = vsub.s32 0, %v1282
        %v1284 = vrot.slane %v1279, %v1283
        %v1285 = vlaneseq
        %v1286 = vshrl.u32 %v1285, 7
        %v1287 = vsub.s32 1, %v1286
        %v1288 = vrot.slane %v1279, %v1287
        %v1291 = vmul.f32 %v1275, %v1284
        %v1292 = vmul.f32 %v1276, %v1288
        %v1293 = vmul.f32 %v1277, %v1284
        %v1294 = vmul.f32 %v1278, %v1288
        %v1295 = vld [vmem:[%s6] sm:$0x3]
        %v1297 = vlaneseq
        %v1298 = vshrl.u32 %v1297, 7
        %v1299 = vsub.s32 0, %v1298
        %v1300 = vrot.slane %v1295, %v1299
        %v1301 = vlaneseq
        %v1302 = vshrl.u32 %v1301, 7
        %v1303 = vsub.s32 1, %v1302
        %v1304 = vrot.slane %v1295, %v1303
        %v1307 = vadd.f32 %v1291, %v1300
        %v1308 = vadd.f32 %v1292, %v1304
        %v1309 = vadd.f32 %v1293, %v1300
        %v1310 = vadd.f32 %v1294, %v1304
        %v1311 = vxor.u32 %v1307, 2147483648
        %v1312 = vxor.u32 %v1308, 2147483648
        %v1313 = vxor.u32 %v1309, 2147483648
        %v1314 = vxor.u32 %v1310, 2147483648
        %v1315 = vmul.f32 %v1311, 1.442695
        %v1316 = vpow.pop %v1315
        %v1317 = vmul.f32 %v1312, 1.442695
        %v1318 = vpow.pop %v1317
        %v1319 = vmul.f32 %v1313, 1.442695
        %v1320 = vpow.pop %v1319
        %v1321 = vmul.f32 %v1314, 1.442695
        %v1322 = vpow.pop %v1321
        %v1323 = vadd.f32 %v1316, 1.0
        %v1324 = vadd.f32 %v1318, 1.0
        %v1325 = vadd.f32 %v1320, 1.0
        %v1326 = vadd.f32 %v1322, 1.0
        %v1327 = vrcp.pop %v1323
        %v1328 = vmul.f32 1.0, %v1327
        %v1329 = vrcp.pop %v1324
        %v1330 = vmul.f32 1.0, %v1329
        %v1331 = vrcp.pop %v1325
        %v1332 = vmul.f32 1.0, %v1331
        %v1333 = vrcp.pop %v1326
        %v1334 = vmul.f32 1.0, %v1333
        %v1335 = vmul.f32 %v1307, %v1328
        %v1336 = vmul.f32 %v1308, %v1330
        %v1337 = vmul.f32 %v1309, %v1332
        %v1338 = vmul.f32 %v1310, %v1334
        %v1339 = vld [vmem:[#allocation6] sm:$0xff]
        %v1340 = vld [vmem:[#allocation6 + $0x8] sm:$0xff]
        %v1341 = vld [vmem:[#allocation6 + $0x10] sm:$0xff]
        %v1342 = vld [vmem:[#allocation6 + $0x18] sm:$0xff]
        %v1343 = vld [vmem:[#allocation6 + $0x20] sm:$0xff]
        %v1344 = vld [vmem:[#allocation6 + $0x28] sm:$0xff]
        %v1345 = vld [vmem:[#allocation6 + $0x30] sm:$0xff]
        %v1346 = vld [vmem:[#allocation6 + $0x38] sm:$0xff]
        %v1347 = vld [vmem:[#allocation6 + $0x40] sm:$0xff]
        %v1348 = vld [vmem:[#allocation6 + $0x48] sm:$0xff]
        %v1349 = vld [vmem:[#allocation6 + $0x50] sm:$0xff]
        %v1350 = vld [vmem:[#allocation6 + $0x58] sm:$0xff]
        %v1351 = vld [vmem:[#allocation6 + $0x60] sm:$0xff]
        %v1352 = vld [vmem:[#allocation6 + $0x68] sm:$0xff]
        %v1353 = vld [vmem:[#allocation6 + $0x70] sm:$0xff]
        %v1354 = vld [vmem:[#allocation6 + $0x78] sm:$0xff]
        %v1355 = vld [vmem:[#allocation6 + $0x80] sm:$0xff]
        %v1356 = vld [vmem:[#allocation6 + $0x88] sm:$0xff]
        %v1357 = vld [vmem:[#allocation6 + $0x90] sm:$0xff]
        %v1358 = vld [vmem:[#allocation6 + $0x98] sm:$0xff]
        %v1359 = vld [vmem:[#allocation6 + $0xa0] sm:$0xff]
        %v1360 = vld [vmem:[#allocation6 + $0xa8] sm:$0xff]
        %v1361 = vld [vmem:[#allocation6 + $0xb0] sm:$0xff]
        %v1362 = vld [vmem:[#allocation6 + $0xb8] sm:$0xff]
        %v1363 = vld [vmem:[#allocation6 + $0xc0] sm:$0xff]
        %v1364 = vld [vmem:[#allocation6 + $0xc8] sm:$0xff]
        %v1365 = vld [vmem:[#allocation6 + $0xd0] sm:$0xff]
        %v1366 = vld [vmem:[#allocation6 + $0xd8] sm:$0xff]
        %v1367 = vld [vmem:[#allocation6 + $0xe0] sm:$0xff]
        %v1368 = vld [vmem:[#allocation6 + $0xe8] sm:$0xff]
        %v1369 = vld [vmem:[#allocation6 + $0xf0] sm:$0xff]
        %v1370 = vld [vmem:[#allocation6 + $0xf8] sm:$0xff]
        %v1371 = vld [vmem:[#allocation6 + $0x100] sm:$0xff]
        %v1372 = vld [vmem:[#allocation6 + $0x108] sm:$0xff]
        %v1373 = vld [vmem:[#allocation6 + $0x110] sm:$0xff]
        %v1374 = vld [vmem:[#allocation6 + $0x118] sm:$0xff]
        %v1375 = vld [vmem:[#allocation6 + $0x120] sm:$0xff]
        %v1376 = vld [vmem:[#allocation6 + $0x128] sm:$0xff]
        %v1377 = vld [vmem:[#allocation6 + $0x130] sm:$0xff]
        %v1378 = vld [vmem:[#allocation6 + $0x138] sm:$0xff]
        %v1379 = vld [vmem:[#allocation6 + $0x140] sm:$0xff]
        %v1380 = vld [vmem:[#allocation6 + $0x148] sm:$0xff]
        %v1381 = vld [vmem:[#allocation6 + $0x150] sm:$0xff]
        %v1382 = vld [vmem:[#allocation6 + $0x158] sm:$0xff]
        %v1383 = vld [vmem:[#allocation6 + $0x160] sm:$0xff]
        %v1384 = vld [vmem:[#allocation6 + $0x168] sm:$0xff]
        %v1385 = vld [vmem:[#allocation6 + $0x170] sm:$0xff]
        %v1386 = vld [vmem:[#allocation6 + $0x178] sm:$0xff]
        %v1387 = vld [vmem:[#allocation6 + $0x180] sm:$0xff]
        %v1388 = vld [vmem:[#allocation6 + $0x188] sm:$0xff]
        %v1389 = vld [vmem:[#allocation6 + $0x190] sm:$0xff]
        %v1390 = vld [vmem:[#allocation6 + $0x198] sm:$0xff]
        %v1391 = vld [vmem:[#allocation6 + $0x1a0] sm:$0xff]
        %v1392 = vld [vmem:[#allocation6 + $0x1a8] sm:$0xff]
        %v1393 = vld [vmem:[#allocation6 + $0x1b0] sm:$0xff]
        %v1394 = vld [vmem:[#allocation6 + $0x1b8] sm:$0xff]
        %v1395 = vld [vmem:[#allocation6 + $0x1c0] sm:$0xff]
        %v1396 = vld [vmem:[#allocation6 + $0x1c8] sm:$0xff]
        %v1397 = vld [vmem:[#allocation6 + $0x1d0] sm:$0xff]
        %v1398 = vld [vmem:[#allocation6 + $0x1d8] sm:$0xff]
        %v1399 = vld [vmem:[#allocation6 + $0x1e0] sm:$0xff]
        %v1400 = vld [vmem:[#allocation6 + $0x1e8] sm:$0xff]
        %v1401 = vld [vmem:[#allocation6 + $0x1f0] sm:$0xff]
        %v1402 = vld [vmem:[#allocation6 + $0x1f8] sm:$0xff]
        %v1403 = vld [vmem:[#allocation6 + $0x200] sm:$0xff]
        %v1404 = vld [vmem:[#allocation6 + $0x208] sm:$0xff]
        %v1405 = vld [vmem:[#allocation6 + $0x210] sm:$0xff]
        %v1406 = vld [vmem:[#allocation6 + $0x218] sm:$0xff]
        %v1407 = vld [vmem:[#allocation6 + $0x220] sm:$0xff]
        %v1408 = vld [vmem:[#allocation6 + $0x228] sm:$0xff]
        %v1409 = vld [vmem:[#allocation6 + $0x230] sm:$0xff]
        %v1410 = vld [vmem:[#allocation6 + $0x238] sm:$0xff]
        %v1411 = vld [vmem:[#allocation6 + $0x240] sm:$0xff]
        %v1412 = vld [vmem:[#allocation6 + $0x248] sm:$0xff]
        %v1413 = vld [vmem:[#allocation6 + $0x250] sm:$0xff]
        %v1414 = vld [vmem:[#allocation6 + $0x258] sm:$0xff]
        %v1415 = vld [vmem:[#allocation6 + $0x260] sm:$0xff]
        %v1416 = vld [vmem:[#allocation6 + $0x268] sm:$0xff]
        %v1417 = vld [vmem:[#allocation6 + $0x270] sm:$0xff]
        %v1418 = vld [vmem:[#allocation6 + $0x278] sm:$0xff]
        %v1419 = vld [vmem:[#allocation6 + $0x280] sm:$0xff]
        %v1420 = vld [vmem:[#allocation6 + $0x288] sm:$0xff]
        %v1421 = vld [vmem:[#allocation6 + $0x290] sm:$0xff]
        %v1422 = vld [vmem:[#allocation6 + $0x298] sm:$0xff]
        %v1423 = vld [vmem:[#allocation6 + $0x2a0] sm:$0xff]
        %v1424 = vld [vmem:[#allocation6 + $0x2a8] sm:$0xff]
        %v1425 = vld [vmem:[#allocation6 + $0x2b0] sm:$0xff]
        %v1426 = vld [vmem:[#allocation6 + $0x2b8] sm:$0xff]
        %v1427 = vld [vmem:[#allocation6 + $0x2c0] sm:$0xff]
        %v1428 = vld [vmem:[#allocation6 + $0x2c8] sm:$0xff]
        %v1429 = vld [vmem:[#allocation6 + $0x2d0] sm:$0xff]
        %v1430 = vld [vmem:[#allocation6 + $0x2d8] sm:$0xff]
        %v1431 = vld [vmem:[#allocation6 + $0x2e0] sm:$0xff]
        %v1432 = vld [vmem:[#allocation6 + $0x2e8] sm:$0xff]
        %v1433 = vld [vmem:[#allocation6 + $0x2f0] sm:$0xff]
        %v1434 = vld [vmem:[#allocation6 + $0x2f8] sm:$0xff]
        %v1435 = vld [vmem:[#allocation6 + $0x300] sm:$0xff]
        %v1436 = vld [vmem:[#allocation6 + $0x308] sm:$0xff]
        %v1437 = vld [vmem:[#allocation6 + $0x310] sm:$0xff]
        %v1438 = vld [vmem:[#allocation6 + $0x318] sm:$0xff]
        %v1439 = vld [vmem:[#allocation6 + $0x320] sm:$0xff]
        %v1440 = vld [vmem:[#allocation6 + $0x328] sm:$0xff]
        %v1441 = vld [vmem:[#allocation6 + $0x330] sm:$0xff]
        %v1442 = vld [vmem:[#allocation6 + $0x338] sm:$0xff]
        %v1443 = vld [vmem:[#allocation6 + $0x340] sm:$0xff]
        %v1444 = vld [vmem:[#allocation6 + $0x348] sm:$0xff]
        %v1445 = vld [vmem:[#allocation6 + $0x350] sm:$0xff]
        %v1446 = vld [vmem:[#allocation6 + $0x358] sm:$0xff]
        %v1447 = vld [vmem:[#allocation6 + $0x360] sm:$0xff]
        %v1448 = vld [vmem:[#allocation6 + $0x368] sm:$0xff]
        %v1449 = vld [vmem:[#allocation6 + $0x370] sm:$0xff]
        %v1450 = vld [vmem:[#allocation6 + $0x378] sm:$0xff]
        %v1451 = vld [vmem:[#allocation6 + $0x380] sm:$0xff]
        %v1452 = vld [vmem:[#allocation6 + $0x388] sm:$0xff]
        %v1453 = vld [vmem:[#allocation6 + $0x390] sm:$0xff]
        %v1454 = vld [vmem:[#allocation6 + $0x398] sm:$0xff]
        %v1455 = vld [vmem:[#allocation6 + $0x3a0] sm:$0xff]
        %v1456 = vld [vmem:[#allocation6 + $0x3a8] sm:$0xff]
        %v1457 = vld [vmem:[#allocation6 + $0x3b0] sm:$0xff]
        %v1458 = vld [vmem:[#allocation6 + $0x3b8] sm:$0xff]
        %v1459 = vld [vmem:[#allocation6 + $0x3c0] sm:$0xff]
        %v1460 = vld [vmem:[#allocation6 + $0x3c8] sm:$0xff]
        %v1461 = vld [vmem:[#allocation6 + $0x3d0] sm:$0xff]
        %v1462 = vld [vmem:[#allocation6 + $0x3d8] sm:$0xff]
        %v1463 = vld [vmem:[#allocation6 + $0x3e0] sm:$0xff]
        %v1464 = vld [vmem:[#allocation6 + $0x3e8] sm:$0xff]
        %v1465 = vld [vmem:[#allocation6 + $0x3f0] sm:$0xff]
        %v1466 = vld [vmem:[#allocation6 + $0x3f8] sm:$0xff]
        %v1467 = vld [vmem:[#allocation6 + $0x400] sm:$0xff]
        %v1468 = vld [vmem:[#allocation6 + $0x408] sm:$0xff]
        %v1469 = vld [vmem:[#allocation6 + $0x410] sm:$0xff]
        %v1470 = vld [vmem:[#allocation6 + $0x418] sm:$0xff]
        %v1471 = vld [vmem:[#allocation6 + $0x420] sm:$0xff]
        %v1472 = vld [vmem:[#allocation6 + $0x428] sm:$0xff]
        %v1473 = vld [vmem:[#allocation6 + $0x430] sm:$0xff]
        %v1474 = vld [vmem:[#allocation6 + $0x438] sm:$0xff]
        %v1475 = vld [vmem:[#allocation6 + $0x440] sm:$0xff]
        %v1476 = vld [vmem:[#allocation6 + $0x448] sm:$0xff]
        %v1477 = vld [vmem:[#allocation6 + $0x450] sm:$0xff]
        %v1478 = vld [vmem:[#allocation6 + $0x458] sm:$0xff]
        %v1479 = vld [vmem:[#allocation6 + $0x460] sm:$0xff]
        %v1480 = vld [vmem:[#allocation6 + $0x468] sm:$0xff]
        %v1481 = vld [vmem:[#allocation6 + $0x470] sm:$0xff]
        %v1482 = vld [vmem:[#allocation6 + $0x478] sm:$0xff]
        %v1483 = vld [vmem:[#allocation6 + $0x480] sm:$0xff]
        %v1484 = vld [vmem:[#allocation6 + $0x488] sm:$0xff]
        %v1485 = vld [vmem:[#allocation6 + $0x490] sm:$0xff]
        %v1486 = vld [vmem:[#allocation6 + $0x498] sm:$0xff]
        %v1487 = vld [vmem:[#allocation6 + $0x4a0] sm:$0xff]
        %v1488 = vld [vmem:[#allocation6 + $0x4a8] sm:$0xff]
        %v1489 = vld [vmem:[#allocation6 + $0x4b0] sm:$0xff]
        %v1490 = vld [vmem:[#allocation6 + $0x4b8] sm:$0xff]
        %v1491 = vld [vmem:[#allocation6 + $0x4c0] sm:$0xff]
        %v1492 = vld [vmem:[#allocation6 + $0x4c8] sm:$0xff]
        %v1493 = vld [vmem:[#allocation6 + $0x4d0] sm:$0xff]
        %v1494 = vld [vmem:[#allocation6 + $0x4d8] sm:$0xff]
        %v1495 = vld [vmem:[#allocation6 + $0x4e0] sm:$0xff]
        %v1496 = vld [vmem:[#allocation6 + $0x4e8] sm:$0xff]
        %v1497 = vld [vmem:[#allocation6 + $0x4f0] sm:$0xff]
        %v1498 = vld [vmem:[#allocation6 + $0x4f8] sm:$0xff]
        %v1499 = vld [vmem:[#allocation6 + $0x500] sm:$0xff]
        %v1500 = vld [vmem:[#allocation6 + $0x508] sm:$0xff]
        %v1501 = vld [vmem:[#allocation6 + $0x510] sm:$0xff]
        %v1502 = vld [vmem:[#allocation6 + $0x518] sm:$0xff]
        %v1503 = vld [vmem:[#allocation6 + $0x520] sm:$0xff]
        %v1504 = vld [vmem:[#allocation6 + $0x528] sm:$0xff]
        %v1505 = vld [vmem:[#allocation6 + $0x530] sm:$0xff]
        %v1506 = vld [vmem:[#allocation6 + $0x538] sm:$0xff]
        %v1507 = vld [vmem:[#allocation6 + $0x540] sm:$0xff]
        %v1508 = vld [vmem:[#allocation6 + $0x548] sm:$0xff]
        %v1509 = vld [vmem:[#allocation6 + $0x550] sm:$0xff]
        %v1510 = vld [vmem:[#allocation6 + $0x558] sm:$0xff]
        %v1511 = vld [vmem:[#allocation6 + $0x560] sm:$0xff]
        %v1512 = vld [vmem:[#allocation6 + $0x568] sm:$0xff]
        %v1513 = vld [vmem:[#allocation6 + $0x570] sm:$0xff]
        %v1514 = vld [vmem:[#allocation6 + $0x578] sm:$0xff]
        %v1515 = vld [vmem:[#allocation6 + $0x580] sm:$0xff]
        %v1516 = vld [vmem:[#allocation6 + $0x588] sm:$0xff]
        %v1517 = vld [vmem:[#allocation6 + $0x590] sm:$0xff]
        %v1518 = vld [vmem:[#allocation6 + $0x598] sm:$0xff]
        %v1519 = vld [vmem:[#allocation6 + $0x5a0] sm:$0xff]
        %v1520 = vld [vmem:[#allocation6 + $0x5a8] sm:$0xff]
        %v1521 = vld [vmem:[#allocation6 + $0x5b0] sm:$0xff]
        %v1522 = vld [vmem:[#allocation6 + $0x5b8] sm:$0xff]
        %v1523 = vld [vmem:[#allocation6 + $0x5c0] sm:$0xff]
        %v1524 = vld [vmem:[#allocation6 + $0x5c8] sm:$0xff]
        %v1525 = vld [vmem:[#allocation6 + $0x5d0] sm:$0xff]
        %v1526 = vld [vmem:[#allocation6 + $0x5d8] sm:$0xff]
        %v1527 = vld [vmem:[#allocation6 + $0x5e0] sm:$0xff]
        %v1528 = vld [vmem:[#allocation6 + $0x5e8] sm:$0xff]
        %v1529 = vld [vmem:[#allocation6 + $0x5f0] sm:$0xff]
        %v1530 = vld [vmem:[#allocation6 + $0x5f8] sm:$0xff]
        %v1531 = vld [vmem:[#allocation6 + $0x600] sm:$0xff]
        %v1532 = vld [vmem:[#allocation6 + $0x608] sm:$0xff]
        %v1533 = vld [vmem:[#allocation6 + $0x610] sm:$0xff]
        %v1534 = vld [vmem:[#allocation6 + $0x618] sm:$0xff]
        %v1535 = vld [vmem:[#allocation6 + $0x620] sm:$0xff]
        %v1536 = vld [vmem:[#allocation6 + $0x628] sm:$0xff]
        %v1537 = vld [vmem:[#allocation6 + $0x630] sm:$0xff]
        %v1538 = vld [vmem:[#allocation6 + $0x638] sm:$0xff]
        %v1539 = vld [vmem:[#allocation6 + $0x640] sm:$0xff]
        %v1540 = vld [vmem:[#allocation6 + $0x648] sm:$0xff]
        %v1541 = vld [vmem:[#allocation6 + $0x650] sm:$0xff]
        %v1542 = vld [vmem:[#allocation6 + $0x658] sm:$0xff]
        %v1543 = vld [vmem:[#allocation6 + $0x660] sm:$0xff]
        %v1544 = vld [vmem:[#allocation6 + $0x668] sm:$0xff]
        %v1545 = vld [vmem:[#allocation6 + $0x670] sm:$0xff]
        %v1546 = vld [vmem:[#allocation6 + $0x678] sm:$0xff]
        %v1547 = vld [vmem:[#allocation6 + $0x680] sm:$0xff]
        %v1548 = vld [vmem:[#allocation6 + $0x688] sm:$0xff]
        %v1549 = vld [vmem:[#allocation6 + $0x690] sm:$0xff]
        %v1550 = vld [vmem:[#allocation6 + $0x698] sm:$0xff]
        %v1551 = vld [vmem:[#allocation6 + $0x6a0] sm:$0xff]
        %v1552 = vld [vmem:[#allocation6 + $0x6a8] sm:$0xff]
        %v1553 = vld [vmem:[#allocation6 + $0x6b0] sm:$0xff]
        %v1554 = vld [vmem:[#allocation6 + $0x6b8] sm:$0xff]
        %v1555 = vld [vmem:[#allocation6 + $0x6c0] sm:$0xff]
        %v1556 = vld [vmem:[#allocation6 + $0x6c8] sm:$0xff]
        %v1557 = vld [vmem:[#allocation6 + $0x6d0] sm:$0xff]
        %v1558 = vld [vmem:[#allocation6 + $0x6d8] sm:$0xff]
        %v1559 = vld [vmem:[#allocation6 + $0x6e0] sm:$0xff]
        %v1560 = vld [vmem:[#allocation6 + $0x6e8] sm:$0xff]
        %v1561 = vld [vmem:[#allocation6 + $0x6f0] sm:$0xff]
        %v1562 = vld [vmem:[#allocation6 + $0x6f8] sm:$0xff]
        %v1563 = vld [vmem:[#allocation6 + $0x700] sm:$0xff]
        %v1564 = vld [vmem:[#allocation6 + $0x708] sm:$0xff]
        %v1565 = vld [vmem:[#allocation6 + $0x710] sm:$0xff]
        %v1566 = vld [vmem:[#allocation6 + $0x718] sm:$0xff]
        %v1567 = vld [vmem:[#allocation6 + $0x720] sm:$0xff]
        %v1568 = vld [vmem:[#allocation6 + $0x728] sm:$0xff]
        %v1569 = vld [vmem:[#allocation6 + $0x730] sm:$0xff]
        %v1570 = vld [vmem:[#allocation6 + $0x738] sm:$0xff]
        %v1571 = vld [vmem:[#allocation6 + $0x740] sm:$0xff]
        %v1572 = vld [vmem:[#allocation6 + $0x748] sm:$0xff]
        %v1573 = vld [vmem:[#allocation6 + $0x750] sm:$0xff]
        %v1574 = vld [vmem:[#allocation6 + $0x758] sm:$0xff]
        %v1575 = vld [vmem:[#allocation6 + $0x760] sm:$0xff]
        %v1576 = vld [vmem:[#allocation6 + $0x768] sm:$0xff]
        %v1577 = vld [vmem:[#allocation6 + $0x770] sm:$0xff]
        %v1578 = vld [vmem:[#allocation6 + $0x778] sm:$0xff]
        %v1579 = vld [vmem:[#allocation6 + $0x780] sm:$0xff]
        %v1580 = vld [vmem:[#allocation6 + $0x788] sm:$0xff]
        %v1581 = vld [vmem:[#allocation6 + $0x790] sm:$0xff]
        %v1582 = vld [vmem:[#allocation6 + $0x798] sm:$0xff]
        %v1583 = vld [vmem:[#allocation6 + $0x7a0] sm:$0xff]
        %v1584 = vld [vmem:[#allocation6 + $0x7a8] sm:$0xff]
        %v1585 = vld [vmem:[#allocation6 + $0x7b0] sm:$0xff]
        %v1586 = vld [vmem:[#allocation6 + $0x7b8] sm:$0xff]
        %v1587 = vld [vmem:[#allocation6 + $0x7c0] sm:$0xff]
        %v1588 = vld [vmem:[#allocation6 + $0x7c8] sm:$0xff]
        %v1589 = vld [vmem:[#allocation6 + $0x7d0] sm:$0xff]
        %v1590 = vld [vmem:[#allocation6 + $0x7d8] sm:$0xff]
        %v1591 = vld [vmem:[#allocation6 + $0x7e0] sm:$0xff]
        %v1592 = vld [vmem:[#allocation6 + $0x7e8] sm:$0xff]
        %v1593 = vld [vmem:[#allocation6 + $0x7f0] sm:$0xff]
        %v1594 = vld [vmem:[#allocation6 + $0x7f8] sm:$0xff]
        %v1595 = vld [vmem:[%s8] sm:$0xff]
        %v1597 = vlaneseq
        %v1598 = vshrl.u32 %v1597, 7
        %v1599 = vsub.s32 0, %v1598
        %v1600 = vrot.slane %v1595, %v1599
        %v1601 = vlaneseq
        %v1602 = vshrl.u32 %v1601, 7
        %v1603 = vsub.s32 1, %v1602
        %v1604 = vrot.slane %v1595, %v1603
        %v1605 = vlaneseq
        %v1606 = vshrl.u32 %v1605, 7
        %v1607 = vsub.s32 2, %v1606
        %v1608 = vrot.slane %v1595, %v1607
        %v1609 = vlaneseq
        %v1610 = vshrl.u32 %v1609, 7
        %v1611 = vsub.s32 3, %v1610
        %v1612 = vrot.slane %v1595, %v1611
        %v1613 = vlaneseq
        %v1614 = vshrl.u32 %v1613, 7
        %v1615 = vsub.s32 4, %v1614
        %v1616 = vrot.slane %v1595, %v1615
        %v1617 = vlaneseq
        %v1618 = vshrl.u32 %v1617, 7
        %v1619 = vsub.s32 5, %v1618
        %v1620 = vrot.slane %v1595, %v1619
        %v1621 = vlaneseq
        %v1622 = vshrl.u32 %v1621, 7
        %v1623 = vsub.s32 6, %v1622
        %v1624 = vrot.slane %v1595, %v1623
        %v1625 = vlaneseq
        %v1626 = vshrl.u32 %v1625, 7
        %v1627 = vsub.s32 7, %v1626
        %v1628 = vrot.slane %v1595, %v1627
        %1637 = vmatprep.subr.mxu0 %v1340
        %1638 = vmatpush1.msra.mxu0 %v1339
        %1639 = vmatprep.subr.mxu0 %v1348
        %1640 = vmatpush1.msra.mxu0 %v1347
        %1641 = vmatprep.subr.mxu0 %v1356
        %1642 = vmatpush1.msra.mxu0 %v1355
        %1643 = vmatprep.subr.mxu0 %v1364
        %1644 = vmatpush1.msra.mxu0 %v1363
        %1645 = vmatprep.subr.mxu0 %v1372
        %1646 = vmatpush1.msra.mxu0 %v1371
        %1647 = vmatprep.subr.mxu0 %v1380
        %1648 = vmatpush1.msra.mxu0 %v1379
        %1649 = vmatprep.subr.mxu0 %v1388
        %1650 = vmatpush1.msra.mxu0 %v1387
        %1651 = vmatprep.subr.mxu0 %v1396
        %1652 = vmatpush1.msra.mxu0 %v1395
        %1653 = vmatprep.subr.mxu0 %v1404
        %1654 = vmatpush1.msra.mxu0 %v1403
        %1655 = vmatprep.subr.mxu0 %v1412
        %1656 = vmatpush1.msra.mxu0 %v1411
        %1657 = vmatprep.subr.mxu0 %v1420
        %1658 = vmatpush1.msra.mxu0 %v1419
        %1659 = vmatprep.subr.mxu0 %v1428
        %1660 = vmatpush1.msra.mxu0 %v1427
        %1661 = vmatprep.subr.mxu0 %v1436
        %1662 = vmatpush1.msra.mxu0 %v1435
        %1663 = vmatprep.subr.mxu0 %v1444
        %1664 = vmatpush1.msra.mxu0 %v1443
        %1665 = vmatprep.subr.mxu0 %v1452
        %1666 = vmatpush1.msra.mxu0 %v1451
        %1667 = vmatprep.subr.mxu0 %v1460
        %1668 = vmatpush1.msra.mxu0 %v1459
        %1669 = vmatprep.subr.mxu0 %v1468
        %1670 = vmatpush1.msra.mxu0 %v1467
        %1671 = vmatprep.subr.mxu0 %v1476
        %1672 = vmatpush1.msra.mxu0 %v1475
        %1673 = vmatprep.subr.mxu0 %v1484
        %1674 = vmatpush1.msra.mxu0 %v1483
        %1675 = vmatprep.subr.mxu0 %v1492
        %1676 = vmatpush1.msra.mxu0 %v1491
        %1677 = vmatprep.subr.mxu0 %v1500
        %1678 = vmatpush1.msra.mxu0 %v1499
        %1679 = vmatprep.subr.mxu0 %v1508
        %1680 = vmatpush1.msra.mxu0 %v1507
        %1681 = vmatprep.subr.mxu0 %v1516
        %1682 = vmatpush1.msra.mxu0 %v1515
        %1683 = vmatprep.subr.mxu0 %v1524
        %1684 = vmatpush1.msra.mxu0 %v1523
        %1685 = vmatprep.subr.mxu0 %v1532
        %1686 = vmatpush1.msra.mxu0 %v1531
        %1687 = vmatprep.subr.mxu0 %v1540
        %1688 = vmatpush1.msra.mxu0 %v1539
        %1689 = vmatprep.subr.mxu0 %v1548
        %1690 = vmatpush1.msra.mxu0 %v1547
        %1691 = vmatprep.subr.mxu0 %v1556
        %1692 = vmatpush1.msra.mxu0 %v1555
        %1693 = vmatprep.subr.mxu0 %v1564
        %1694 = vmatpush1.msra.mxu0 %v1563
        %1695 = vmatprep.subr.mxu0 %v1572
        %1696 = vmatpush1.msra.mxu0 %v1571
        %1697 = vmatprep.subr.mxu0 %v1580
        %1698 = vmatpush1.msra.mxu0 %v1579
        %1699 = vmatprep.subr.mxu0 %v1588
        %1700 = vmatpush1.msra.mxu0 %v1587
        %1701 = vmatprep.mubr.f32.mxu0 %v1336
        %1702 = vmatmul.mubr.f32.gmra.mrb[0].mxu0 %v1335
        %v1703 = vpop.f32.mrb[0].mxu0
        %v1704 = vadd.f32 %v1600, %v1703
        %v1705 = vpop.f32.mrb[0].mxu0
        %v1706 = vadd.f32 %v1604, %v1705
        %1707 = vmatprep.mubr.f32.mxu0 %v1338
        %1708 = vmatmul.mubr.f32.gmra.mrb[0].mxu0 %v1337
        %v1709 = vpop.f32.mrb[0].mxu0
        %v1710 = vadd.f32 %v1600, %v1709
        %v1711 = vpop.f32.mrb[0].mxu0
        %v1712 = vadd.f32 %v1604, %v1711
        %1713 = vdwg.mxu0
        %1714 = vmatprep.subr.mxu0 %v1342
        %1715 = vmatpush1.msra.mxu0 %v1341
        %1716 = vmatprep.subr.mxu0 %v1350
        %1717 = vmatpush1.msra.mxu0 %v1349
        %1718 = vmatprep.subr.mxu0 %v1358
        %1719 = vmatpush1.msra.mxu0 %v1357
        %1720 = vmatprep.subr.mxu0 %v1366
        %1721 = vmatpush1.msra.mxu0 %v1365
        %1722 = vmatprep.subr.mxu0 %v1374
        %1723 = vmatpush1.msra.mxu0 %v1373
        %1724 = vmatprep.subr.mxu0 %v1382
        %1725 = vmatpush1.msra.mxu0 %v1381
        %1726 = vmatprep.subr.mxu0 %v1390
        %1727 = vmatpush1.msra.mxu0 %v1389
        %1728 = vmatprep.subr.mxu0 %v1398
        %1729 = vmatpush1.msra.mxu0 %v1397
        %1730 = vmatprep.subr.mxu0 %v1406
        %1731 = vmatpush1.msra.mxu0 %v1405
        %1732 = vmatprep.subr.mxu0 %v1414
        %1733 = vmatpush1.msra.mxu0 %v1413
        %1734 = vmatprep.subr.mxu0 %v1422
        %1735 = vmatpush1.msra.mxu0 %v1421
        %1736 = vmatprep.subr.mxu0 %v1430
        %1737 = vmatpush1.msra.mxu0 %v1429
        %1738 = vmatprep.subr.mxu0 %v1438
        %1739 = vmatpush1.msra.mxu0 %v1437
        %1740 = vmatprep.subr.mxu0 %v1446
        %1741 = vmatpush1.msra.mxu0 %v1445
        %1742 = vmatprep.subr.mxu0 %v1454
        %1743 = vmatpush1.msra.mxu0 %v1453
        %1744 = vmatprep.subr.mxu0 %v1462
        %1745 = vmatpush1.msra.mxu0 %v1461
        %1746 = vmatprep.subr.mxu0 %v1470
        %1747 = vmatpush1.msra.mxu0 %v1469
        %1748 = vmatprep.subr.mxu0 %v1478
        %1749 = vmatpush1.msra.mxu0 %v1477
        %1750 = vmatprep.subr.mxu0 %v1486
        %1751 = vmatpush1.msra.mxu0 %v1485
        %1752 = vmatprep.subr.mxu0 %v1494
        %1753 = vmatpush1.msra.mxu0 %v1493
        %1754 = vmatprep.subr.mxu0 %v1502
        %1755 = vmatpush1.msra.mxu0 %v1501
        %1756 = vmatprep.subr.mxu0 %v1510
        %1757 = vmatpush1.msra.mxu0 %v1509
        %1758 = vmatprep.subr.mxu0 %v1518
        %1759 = vmatpush1.msra.mxu0 %v1517
        %1760 = vmatprep.subr.mxu0 %v1526
        %1761 = vmatpush1.msra.mxu0 %v1525
        %1762 = vmatprep.subr.mxu0 %v1534
        %1763 = vmatpush1.msra.mxu0 %v1533
        %1764 = vmatprep.subr.mxu0 %v1542
        %1765 = vmatpush1.msra.mxu0 %v1541
        %1766 = vmatprep.subr.mxu0 %v1550
        %1767 = vmatpush1.msra.mxu0 %v1549
        %1768 = vmatprep.subr.mxu0 %v1558
        %1769 = vmatpush1.msra.mxu0 %v1557
        %1770 = vmatprep.subr.mxu0 %v1566
        %1771 = vmatpush1.msra.mxu0 %v1565
        %1772 = vmatprep.subr.mxu0 %v1574
        %1773 = vmatpush1.msra.mxu0 %v1573
        %1774 = vmatprep.subr.mxu0 %v1582
        %1775 = vmatpush1.msra.mxu0 %v1581
        %1776 = vmatprep.subr.mxu0 %v1590
        %1777 = vmatpush1.msra.mxu0 %v1589
        %1778 = vmatprep.mubr.f32.mxu0 %v1336
        %1779 = vmatmul.mubr.f32.gmra.mrb[0].mxu0 %v1335
        %v1780 = vpop.f32.mrb[0].mxu0
        %v1781 = vadd.f32 %v1608, %v1780
        %v1782 = vpop.f32.mrb[0].mxu0
        %v1783 = vadd.f32 %v1612, %v1782
        %1784 = vmatprep.mubr.f32.mxu0 %v1338
        %1785 = vmatmul.mubr.f32.gmra.mrb[0].mxu0 %v1337
        %v1786 = vpop.f32.mrb[0].mxu0
        %v1787 = vadd.f32 %v1608, %v1786
        %v1788 = vpop.f32.mrb[0].mxu0
        %v1789 = vadd.f32 %v1612, %v1788
        %1790 = vdwg.mxu0
        %1791 = vmatprep.subr.mxu0 %v1344
        %1792 = vmatpush1.msra.mxu0 %v1343
        %1793 = vmatprep.subr.mxu0 %v1352
        %1794 = vmatpush1.msra.mxu0 %v1351
        %1795 = vmatprep.subr.mxu0 %v1360
        %1796 = vmatpush1.msra.mxu0 %v1359
        %1797 = vmatprep.subr.mxu0 %v1368
        %1798 = vmatpush1.msra.mxu0 %v1367
        %1799 = vmatprep.subr.mxu0 %v1376
        %1800 = vmatpush1.msra.mxu0 %v1375
        %1801 = vmatprep.subr.mxu0 %v1384
        %1802 = vmatpush1.msra.mxu0 %v1383
        %1803 = vmatprep.subr.mxu0 %v1392
        %1804 = vmatpush1.msra.mxu0 %v1391
        %1805 = vmatprep.subr.mxu0 %v1400
        %1806 = vmatpush1.msra.mxu0 %v1399
        %1807 = vmatprep.subr.mxu0 %v1408
        %1808 = vmatpush1.msra.mxu0 %v1407
        %1809 = vmatprep.subr.mxu0 %v1416
        %1810 = vmatpush1.msra.mxu0 %v1415
        %1811 = vmatprep.subr.mxu0 %v1424
        %1812 = vmatpush1.msra.mxu0 %v1423
        %1813 = vmatprep.subr.mxu0 %v1432
        %1814 = vmatpush1.msra.mxu0 %v1431
        %1815 = vmatprep.subr.mxu0 %v1440
        %1816 = vmatpush1.msra.mxu0 %v1439
        %1817 = vmatprep.subr.mxu0 %v1448
        %1818 = vmatpush1.msra.mxu0 %v1447
        %1819 = vmatprep.subr.mxu0 %v1456
        %1820 = vmatpush1.msra.mxu0 %v1455
        %1821 = vmatprep.subr.mxu0 %v1464
        %1822 = vmatpush1.msra.mxu0 %v1463
        %1823 = vmatprep.subr.mxu0 %v1472
        %1824 = vmatpush1.msra.mxu0 %v1471
        %1825 = vmatprep.subr.mxu0 %v1480
        %1826 = vmatpush1.msra.mxu0 %v1479
        %1827 = vmatprep.subr.mxu0 %v1488
        %1828 = vmatpush1.msra.mxu0 %v1487
        %1829 = vmatprep.subr.mxu0 %v1496
        %1830 = vmatpush1.msra.mxu0 %v1495
        %1831 = vmatprep.subr.mxu0 %v1504
        %1832 = vmatpush1.msra.mxu0 %v1503
        %1833 = vmatprep.subr.mxu0 %v1512
        %1834 = vmatpush1.msra.mxu0 %v1511
        %1835 = vmatprep.subr.mxu0 %v1520
        %1836 = vmatpush1.msra.mxu0 %v1519
        %1837 = vmatprep.subr.mxu0 %v1528
        %1838 = vmatpush1.msra.mxu0 %v1527
        %1839 = vmatprep.subr.mxu0 %v1536
        %1840 = vmatpush1.msra.mxu0 %v1535
        %1841 = vmatprep.subr.mxu0 %v1544
        %1842 = vmatpush1.msra.mxu0 %v1543
        %1843 = vmatprep.subr.mxu0 %v1552
        %1844 = vmatpush1.msra.mxu0 %v1551
        %1845 = vmatprep.subr.mxu0 %v1560
        %1846 = vmatpush1.msra.mxu0 %v1559
        %1847 = vmatprep.subr.mxu0 %v1568
        %1848 = vmatpush1.msra.mxu0 %v1567
        %1849 = vmatprep.subr.mxu0 %v1576
        %1850 = vmatpush1.msra.mxu0 %v1575
        %1851 = vmatprep.subr.mxu0 %v1584
        %1852 = vmatpush1.msra.mxu0 %v1583
        %1853 = vmatprep.subr.mxu0 %v1592
        %1854 = vmatpush1.msra.mxu0 %v1591
        %1855 = vmatprep.mubr.f32.mxu0 %v1336
        %1856 = vmatmul.mubr.f32.gmra.mrb[0].mxu0 %v1335
        %v1857 = vpop.f32.mrb[0].mxu0
        %v1858 = vadd.f32 %v1616, %v1857
        %v1859 = vpop.f32.mrb[0].mxu0
        %v1860 = vadd.f32 %v1620, %v1859
        %1861 = vmatprep.mubr.f32.mxu0 %v1338
        %1862 = vmatmul.mubr.f32.gmra.mrb[0].mxu0 %v1337
        %v1863 = vpop.f32.mrb[0].mxu0
        %v1864 = vadd.f32 %v1616, %v1863
        %v1865 = vpop.f32.mrb[0].mxu0
        %v1866 = vadd.f32 %v1620, %v1865
        %1867 = vdwg.mxu0
        %1868 = vmatprep.subr.mxu0 %v1346
        %1869 = vmatpush1.msra.mxu0 %v1345
        %1870 = vmatprep.subr.mxu0 %v1354
        %1871 = vmatpush1.msra.mxu0 %v1353
        %1872 = vmatprep.subr.mxu0 %v1362
        %1873 = vmatpush1.msra.mxu0 %v1361
        %1874 = vmatprep.subr.mxu0 %v1370
        %1875 = vmatpush1.msra.mxu0 %v1369
        %1876 = vmatprep.subr.mxu0 %v1378
        %1877 = vmatpush1.msra.mxu0 %v1377
        %1878 = vmatprep.subr.mxu0 %v1386
        %1879 = vmatpush1.msra.mxu0 %v1385
        %1880 = vmatprep.subr.mxu0 %v1394
        %1881 = vmatpush1.msra.mxu0 %v1393
        %1882 = vmatprep.subr.mxu0 %v1402
        %1883 = vmatpush1.msra.mxu0 %v1401
        %1884 = vmatprep.subr.mxu0 %v1410
        %1885 = vmatpush1.msra.mxu0 %v1409
        %1886 = vmatprep.subr.mxu0 %v1418
        %1887 = vmatpush1.msra.mxu0 %v1417
        %1888 = vmatprep.subr.mxu0 %v1426
        %1889 = vmatpush1.msra.mxu0 %v1425
        %1890 = vmatprep.subr.mxu0 %v1434
        %1891 = vmatpush1.msra.mxu0 %v1433
        %1892 = vmatprep.subr.mxu0 %v1442
        %1893 = vmatpush1.msra.mxu0 %v1441
        %1894 = vmatprep.subr.mxu0 %v1450
        %1895 = vmatpush1.msra.mxu0 %v1449
        %1896 = vmatprep.subr.mxu0 %v1458
        %1897 = vmatpush1.msra.mxu0 %v1457
        %1898 = vmatprep.subr.mxu0 %v1466
        %1899 = vmatpush1.msra.mxu0 %v1465
        %1900 = vmatprep.subr.mxu0 %v1474
        %1901 = vmatpush1.msra.mxu0 %v1473
        %1902 = vmatprep.subr.mxu0 %v1482
        %1903 = vmatpush1.msra.mxu0 %v1481
        %1904 = vmatprep.subr.mxu0 %v1490
        %1905 = vmatpush1.msra.mxu0 %v1489
        %1906 = vmatprep.subr.mxu0 %v1498
        %1907 = vmatpush1.msra.mxu0 %v1497
        %1908 = vmatprep.subr.mxu0 %v1506
        %1909 = vmatpush1.msra.mxu0 %v1505
        %1910 = vmatprep.subr.mxu0 %v1514
        %1911 = vmatpush1.msra.mxu0 %v1513
        %1912 = vmatprep.subr.mxu0 %v1522
        %1913 = vmatpush1.msra.mxu0 %v1521
        %1914 = vmatprep.subr.mxu0 %v1530
        %1915 = vmatpush1.msra.mxu0 %v1529
        %1916 = vmatprep.subr.mxu0 %v1538
        %1917 = vmatpush1.msra.mxu0 %v1537
        %1918 = vmatprep.subr.mxu0 %v1546
        %1919 = vmatpush1.msra.mxu0 %v1545
        %1920 = vmatprep.subr.mxu0 %v1554
        %1921 = vmatpush1.msra.mxu0 %v1553
        %1922 = vmatprep.subr.mxu0 %v1562
        %1923 = vmatpush1.msra.mxu0 %v1561
        %1924 = vmatprep.subr.mxu0 %v1570
        %1925 = vmatpush1.msra.mxu0 %v1569
        %1926 = vmatprep.subr.mxu0 %v1578
        %1927 = vmatpush1.msra.mxu0 %v1577
        %1928 = vmatprep.subr.mxu0 %v1586
        %1929 = vmatpush1.msra.mxu0 %v1585
        %1930 = vmatprep.subr.mxu0 %v1594
        %1931 = vmatpush1.msra.mxu0 %v1593
        %1932 = vmatprep.mubr.f32.mxu0 %v1336
        %1933 = vmatmul.mubr.f32.gmra.mrb[0].mxu0 %v1335
        %v1934 = vpop.f32.mrb[0].mxu0
        %v1935 = vadd.f32 %v1624, %v1934
        %v1936 = vpop.f32.mrb[0].mxu0
        %v1937 = vadd.f32 %v1628, %v1936
        %1938 = vmatprep.mubr.f32.mxu0 %v1338
        %1939 = vmatmul.mubr.f32.gmra.mrb[0].mxu0 %v1337
        %v1940 = vpop.f32.mrb[0].mxu0
        %v1941 = vadd.f32 %v1624, %v1940
        %v1942 = vpop.f32.mrb[0].mxu0
        %v1943 = vadd.f32 %v1628, %v1942
        %1944 = vdwg.mxu0
        %1945 = vst [vmem:[%s362] sm:$0xff] %v1704
        %1946 = vst [vmem:[%s362 + $0x8] sm:$0xff] %v1706
        %1947 = vst [vmem:[%s362 + $0x10] sm:$0xff] %v1781
        %1948 = vst [vmem:[%s362 + $0x18] sm:$0xff] %v1783
        %1949 = vst [vmem:[%s362 + $0x20] sm:$0xff] %v1858
        %1950 = vst [vmem:[%s362 + $0x28] sm:$0xff] %v1860
        %1951 = vst [vmem:[%s362 + $0x30] sm:$0xff] %v1935
        %1952 = vst [vmem:[%s362 + $0x38] sm:$0xff] %v1937
        %1953 = vst [vmem:[%s362 + $0x40] sm:$0xff] %v1710
        %1954 = vst [vmem:[%s362 + $0x48] sm:$0xff] %v1712
        %1955 = vst [vmem:[%s362 + $0x50] sm:$0xff] %v1787
        %1956 = vst [vmem:[%s362 + $0x58] sm:$0xff] %v1789
        %1957 = vst [vmem:[%s362 + $0x60] sm:$0xff] %v1864
        %1958 = vst [vmem:[%s362 + $0x68] sm:$0xff] %v1866
        %1959 = vst [vmem:[%s362 + $0x70] sm:$0xff] %v1941
        %1960 = vst [vmem:[%s362 + $0x78] sm:$0xff] %v1943
        %p1961 = scmp.lt.s32.totalorder %s22, 1
        %s1962 = scalar_select %p1961, %s22, 1
        %s1963 = smul.addr %s1962, 16
        %s1964 = smul.addr %s1963, 8
        %s1965 = scalar_lea.vmem %s9, %s1964
        // Predicated region
        $region65: #{yolov10_regression_head_pallas.1} parent=55 // pred_check
          %p1966 = pneg %p234
        $region66: #{yolov10_regression_head_pallas.1} parent=55 // pred_check_branch
          %1968 = sbr.rel (%p1966) target = $region68
        $region67: #{yolov10_regression_head_pallas.1} parent=55 // pred_region
          _
        $region68: #{yolov10_regression_head_pallas.1} parent=55 // pred_fallthru
          _
      $region56: #{yolov10_regression_head_pallas.1} parent=5 // pred_fallthru
        _
      %p1969 = scmp.le.s32.totalorder 2, %s17
      // Predicated region
      $region69: #{yolov10_regression_head_pallas.1} parent=5 // pred_check
        %p1970 = pneg %p1969
      $region70: #{yolov10_regression_head_pallas.1} parent=5 // pred_check_branch
        %1972 = sbr.rel (%p1970) target = $region72
      $region71: #{yolov10_regression_head_pallas.1} parent=5 // pred_region
        %s1973 = ssub.s32 %s17, 2
        // Predicated region
        $region73: #{yolov10_regression_head_pallas.1} parent=71 // pred_check
          %p1974 = pneg %p240
        $region74: #{yolov10_regression_head_pallas.1} parent=71 // pred_check_branch
          %1976 = sbr.rel (%p1974) target = $region76
        $region75: #{yolov10_regression_head_pallas.1} parent=71 // pred_region
          %p1977 = scmp.lt.s32.totalorder %s23, 1
          %s1978 = scalar_select %p1977, %s23, 1
          %s1979 = smul.addr %s1978, 16
          %s1980 = smul.addr %s1979, 8
          %s1981 = scalar_lea.vmem %s9, %s1980
        $region76: #{yolov10_regression_head_pallas.1} parent=71 // pred_fallthru
          _
      $region72: #{yolov10_regression_head_pallas.1} parent=5 // pred_fallthru
        _
    $region6: #{yolov10_regression_head_pallas.1} parent=1 // loop_footer
      %s21 = sadd.s32 1, %s17
    $region7: #{yolov10_regression_head_pallas.1} parent=1 // loop_footer_branch
      %16 = sbr.rel target = $region3
    $region8: #{yolov10_regression_head_pallas.1} parent=1 // loop_exit
      _
    %1982 = vsyncpa [#allocation5], 1
    %s1983 = scalar_lea.sflag [#allocation5], 1
    %1984 = vsyncpa %s1983, 1
    %1985 = vsyncpa [#allocation7], 1

</llo_original>
